<compile_context>
chip_gen: v5e
topology: v5e:2x2
jax: 0.10.0
libtpu: 0.0.40
codegen_flags: <defaults>
</compile_context>

<pallas_src>
import functools
import math

import jax
import jax.numpy as jnp
from jax import lax
from jax.experimental import pallas as pl
from jax.experimental.pallas import tpu as pltpu


def _attention_kernel(x_ref, wq_ref, wk_ref, wv_ref, bq_ref, bk_ref, bv_ref,
                      o_ref, *, inv_scale):
    # x_ref: (C, S) slab of the current batch element (batch dim squeezed).
    x = x_ref[...].astype(jnp.float32)
    wq = wq_ref[...].astype(jnp.float32)      # (C, C)  (out_ch, in_ch)
    wk = wk_ref[...].astype(jnp.float32)
    wv = wv_ref[...].astype(jnp.float32)
    bq = bq_ref[...].astype(jnp.float32)      # (C, 1)
    bk = bk_ref[...].astype(jnp.float32)
    bv = bv_ref[...].astype(jnp.float32)

    hi = lax.Precision.HIGHEST

    # 1x1 Conv1d == matmul over the channel axis (MXU).
    q = jnp.dot(wq, x, preferred_element_type=jnp.float32, precision=hi) + bq  # (C, S)
    k = jnp.dot(wk, x, preferred_element_type=jnp.float32, precision=hi) + bk  # (C, S)
    v = jnp.dot(wv, x, preferred_element_type=jnp.float32, precision=hi) + bv  # (C, S)

    # scores[s1, s2] = sum_c q[c, s1] * k[c, s2] / sqrt(C)   -> (S, S)
    scores = lax.dot_general(q, k, (((0,), (0,)), ((), ())),
                             preferred_element_type=jnp.float32,
                             precision=hi) * inv_scale

    # Numerically-stable softmax along the last axis.
    m = jnp.max(scores, axis=-1, keepdims=True)
    e = jnp.exp(scores - m)
    attn = e / jnp.sum(e, axis=-1, keepdims=True)               # (S, S)

    # out[c, s1] = sum_s2 v[c, s2] * attn[s1, s2]              -> (C, S)
    out = lax.dot_general(v, attn, (((1,), (1,)), ((), ())),
                          preferred_element_type=jnp.float32,
                          precision=hi)

    o_ref[...] = (out + x).astype(o_ref.dtype)                  # residual add


def attention_module(x, wq, bq, wk, bk, wv, bv):
    """Pallas equivalent of AttentionModule.forward.

    x        : (B, C, S)  -- same layout as the PyTorch module
    wq/wk/wv : (C, C)     Conv1d(kernel_size=1) weights, (out_ch, in_ch)
    bq/bk/bv : (C,)       Conv1d biases
    returns  : (B, C, S)
    """
    B, C, S = x.shape
    inv_scale = 1.0 / math.sqrt(float(C))

    bq2 = bq.reshape(C, 1)
    bk2 = bk.reshape(C, 1)
    bv2 = bv.reshape(C, 1)

    kernel = functools.partial(_attention_kernel, inv_scale=inv_scale)

    x_spec = pl.BlockSpec((None, C, S), lambda b: (b, 0, 0))
    w_spec = pl.BlockSpec((C, C), lambda b: (0, 0))   # constant -> stays resident
    b_spec = pl.BlockSpec((C, 1), lambda b: (0, 0))

    return pl.pallas_call(
        kernel,
        out_shape=jax.ShapeDtypeStruct((B, C, S), x.dtype),
        grid_spec=pltpu.PrefetchScalarGridSpec(
            num_scalar_prefetch=0,
            grid=(B,),
            in_specs=[x_spec, w_spec, w_spec, w_spec, b_spec, b_spec, b_spec],
            out_specs=pl.BlockSpec((None, C, S), lambda b: (b, 0, 0)),
        ),
        compiler_params=pltpu.CompilerParams(
            # Batch elements are independent -> allow megacore sharding (v7x).
            dimension_semantics=("parallel",),
        ),
    )(x, wq, wk, wv, bq2, bk2, bv2)


def _attention_ref(x, wq, bq, wk, bk, wv, bv):
    """Pure-JAX reference mirroring the PyTorch module."""
    B, C, S = x.shape
    hi = lax.Precision.HIGHEST
    scale = math.sqrt(float(C))

    def conv1x1(w, b):
        return jnp.einsum('oc,bcs->bos', w, x, precision=hi) + b[None, :, None]

    q = conv1x1(wq, bq)
    k = conv1x1(wk, bk)
    v = conv1x1(wv, bv)
    qt = jnp.transpose(q, (0, 2, 1))      # (B, S, C)
    kt = jnp.transpose(k, (0, 2, 1))
    vt = jnp.transpose(v, (0, 2, 1))
    att = jnp.einsum('bqc,bkc->bqk', qt, kt, precision=hi) / scale
    att = jax.nn.softmax(att, axis=-1)
    out = jnp.einsum('bqk,bkc->bqc', att, vt, precision=hi)
    return jnp.transpose(out, (0, 2, 1)) + x


if __name__ == "__main__":
    key = jax.random.PRNGKey(0)
    kx, kq, kk, kv, kbq, kbk, kbv = jax.random.split(key, 7)

    # Small shapes consistent with the module: (batch, channels, seq_len).
    B, C, S = 2, 32, 16
    x = jax.random.normal(kx, (B, C, S), jnp.float32)
    w_scale = 1.0 / math.sqrt(C)
    wq = jax.random.normal(kq, (C, C), jnp.float32) * w_scale
    wk = jax.random.normal(kk, (C, C), jnp.float32) * w_scale
    wv = jax.random.normal(kv, (C, C), jnp.float32) * w_scale
    bq = jax.random.normal(kbq, (C,), jnp.float32) * 0.1
    bk = jax.random.normal(kbk, (C,), jnp.float32) * 0.1
    bv = jax.random.normal(kbv, (C,), jnp.float32) * 0.1

    out = attention_module(x, wq, bq, wk, bk, wv, bv)
    out = jax.block_until_ready(out)

    ref = _attention_ref(x, wq, bq, wk, bk, wv, bv)
    max_err = float(jnp.max(jnp.abs(out - ref)))
    assert jnp.allclose(out, ref, rtol=2e-3, atol=2e-3), max_err

    print("KERNEL_OK")
</pallas_src>

<mosaic_0001>
module attributes {stable_mosaic.version = 11 : i64} {
  func.func @_attention_kernel(%arg0: i32, %arg1: memref<1x32x16xf32, #tpu.memory_space<vmem>>, %arg2: memref<32x32xf32, #tpu.memory_space<vmem>>, %arg3: memref<32x32xf32, #tpu.memory_space<vmem>>, %arg4: memref<32x32xf32, #tpu.memory_space<vmem>>, %arg5: memref<32x1xf32, #tpu.memory_space<vmem>>, %arg6: memref<32x1xf32, #tpu.memory_space<vmem>>, %arg7: memref<32x1xf32, #tpu.memory_space<vmem>>, %arg8: memref<1x32x16xf32, #tpu.memory_space<vmem>>) attributes {dimension_semantics = [#tpu.dimension_semantics<parallel>], iteration_bounds = array<i64: 2>, scalar_prefetch = 0 : i64, scratch_operands = 0 : i64, tpu.core_type = #tpu.core_type<tc>, window_params = [{transform_indices = @transform_0, window_bounds = array<i64: 1, 32, 16>}, {pipeline_mode = #tpu.pipeline_mode<synchronous>, transform_indices = @transform_1, window_bounds = array<i64: 32, 32>}, {pipeline_mode = #tpu.pipeline_mode<synchronous>, transform_indices = @transform_2, window_bounds = array<i64: 32, 32>}, {pipeline_mode = #tpu.pipeline_mode<synchronous>, transform_indices = @transform_3, window_bounds = array<i64: 32, 32>}, {pipeline_mode = #tpu.pipeline_mode<synchronous>, transform_indices = @transform_4, window_bounds = array<i64: 32, 1>}, {pipeline_mode = #tpu.pipeline_mode<synchronous>, transform_indices = @transform_5, window_bounds = array<i64: 32, 1>}, {pipeline_mode = #tpu.pipeline_mode<synchronous>, transform_indices = @transform_6, window_bounds = array<i64: 32, 1>}, {transform_indices = @transform_7, window_bounds = array<i64: 1, 32, 16>}]} {
    %c0 = arith.constant 0 : index
    %c0_0 = arith.constant 0 : index
    %c0_1 = arith.constant 0 : index
    %0 = vector.load %arg1[%c0, %c0_0, %c0_1] : memref<1x32x16xf32, #tpu.memory_space<vmem>>, vector<1x32x16xf32>
    %1 = vector.shape_cast %0 : vector<1x32x16xf32> to vector<32x16xf32>
    %c0_2 = arith.constant 0 : index
    %c0_3 = arith.constant 0 : index
    %2 = vector.load %arg2[%c0_2, %c0_3] : memref<32x32xf32, #tpu.memory_space<vmem>>, vector<32x32xf32>
    %c0_4 = arith.constant 0 : index
    %c0_5 = arith.constant 0 : index
    %3 = vector.load %arg3[%c0_4, %c0_5] : memref<32x32xf32, #tpu.memory_space<vmem>>, vector<32x32xf32>
    %c0_6 = arith.constant 0 : index
    %c0_7 = arith.constant 0 : index
    %4 = vector.load %arg4[%c0_6, %c0_7] : memref<32x32xf32, #tpu.memory_space<vmem>>, vector<32x32xf32>
    %c0_8 = arith.constant 0 : index
    %c0_9 = arith.constant 0 : index
    %5 = vector.load %arg5[%c0_8, %c0_9] : memref<32x1xf32, #tpu.memory_space<vmem>>, vector<32x1xf32>
    %c0_10 = arith.constant 0 : index
    %c0_11 = arith.constant 0 : index
    %6 = vector.load %arg6[%c0_10, %c0_11] : memref<32x1xf32, #tpu.memory_space<vmem>>, vector<32x1xf32>
    %c0_12 = arith.constant 0 : index
    %c0_13 = arith.constant 0 : index
    %7 = vector.load %arg7[%c0_12, %c0_13] : memref<32x1xf32, #tpu.memory_space<vmem>>, vector<32x1xf32>
    %cst = arith.constant dense<0.000000e+00> : vector<32x16xf32>
    %8 = tpu.matmul %2, %1, %cst {dimension_numbers = #tpu.dot_dimension_numbers<[1], [0], [0], [1], [0, 0, 1, 1], [], []>, precision = #tpu.contract_precision<fp32>} : vector<32x32xf32>, vector<32x16xf32>, vector<32x16xf32> -> vector<32x16xf32>
    %9 = vector.broadcast %5 : vector<32x1xf32> to vector<32x16xf32>
    %10 = arith.addf %8, %9 : vector<32x16xf32>
    %cst_14 = arith.constant dense<0.000000e+00> : vector<32x16xf32>
    %11 = tpu.matmul %3, %1, %cst_14 {dimension_numbers = #tpu.dot_dimension_numbers<[1], [0], [0], [1], [0, 0, 1, 1], [], []>, precision = #tpu.contract_precision<fp32>} : vector<32x32xf32>, vector<32x16xf32>, vector<32x16xf32> -> vector<32x16xf32>
    %12 = vector.broadcast %6 : vector<32x1xf32> to vector<32x16xf32>
    %13 = arith.addf %11, %12 : vector<32x16xf32>
    %cst_15 = arith.constant dense<0.000000e+00> : vector<32x16xf32>
    %14 = tpu.matmul %4, %1, %cst_15 {dimension_numbers = #tpu.dot_dimension_numbers<[1], [0], [0], [1], [0, 0, 1, 1], [], []>, precision = #tpu.contract_precision<fp32>} : vector<32x32xf32>, vector<32x16xf32>, vector<32x16xf32> -> vector<32x16xf32>
    %15 = vector.broadcast %7 : vector<32x1xf32> to vector<32x16xf32>
    %16 = arith.addf %14, %15 : vector<32x16xf32>
    %cst_16 = arith.constant dense<0.000000e+00> : vector<16x16xf32>
    %17 = tpu.matmul %10, %13, %cst_16 {dimension_numbers = #tpu.dot_dimension_numbers<[0], [0], [1], [1], [0, 1, 1, 1], [], []>, precision = #tpu.contract_precision<fp32>} : vector<32x16xf32>, vector<32x16xf32>, vector<16x16xf32> -> vector<16x16xf32>
    %cst_17 = arith.constant 0.176776692 : f32
    %18 = vector.broadcast %cst_17 : f32 to vector<16x16xf32>
    %19 = arith.mulf %17, %18 : vector<16x16xf32>
    %cst_18 = arith.constant dense<0xFF800000> : vector<16xf32>
    %20 = vector.multi_reduction <maximumf>, %19, %cst_18 [1] : vector<16x16xf32> to vector<16xf32>
    %21 = vector.shape_cast %20 : vector<16xf32> to vector<16x1xf32>
    %22 = vector.broadcast %21 : vector<16x1xf32> to vector<16x16xf32>
    %23 = arith.subf %19, %22 : vector<16x16xf32>
    %24 = math.exp %23 : vector<16x16xf32>
    %cst_19 = arith.constant dense<0.000000e+00> : vector<16xf32>
    %25 = vector.multi_reduction <add>, %24, %cst_19 [1] : vector<16x16xf32> to vector<16xf32>
    %26 = vector.shape_cast %25 : vector<16xf32> to vector<16x1xf32>
    %27 = vector.broadcast %26 : vector<16x1xf32> to vector<16x16xf32>
    %28 = arith.divf %24, %27 : vector<16x16xf32>
    %cst_20 = arith.constant dense<0.000000e+00> : vector<32x16xf32>
    %29 = tpu.matmul %16, %28, %cst_20 {dimension_numbers = #tpu.dot_dimension_numbers<[1], [1], [0], [0], [0, 0, 1, 0], [], []>, precision = #tpu.contract_precision<fp32>} : vector<32x16xf32>, vector<16x16xf32>, vector<32x16xf32> -> vector<32x16xf32>
    %30 = arith.addf %29, %1 : vector<32x16xf32>
    %c0_21 = arith.constant 0 : index
    %c0_22 = arith.constant 0 : index
    %c0_23 = arith.constant 0 : index
    %31 = vector.load %arg8[%c0_21, %c0_22, %c0_23] : memref<1x32x16xf32, #tpu.memory_space<vmem>>, vector<1x32x16xf32>
    %32 = vector.shape_cast %31 : vector<1x32x16xf32> to vector<32x16xf32>
    %33 = vector.shape_cast %30 : vector<32x16xf32> to vector<1x32x16xf32>
    tpu.vector_store %arg8[%c0_21, %c0_22, %c0_23], %33 {strides = array<i32>} : memref<1x32x16xf32, #tpu.memory_space<vmem>>, vector<1x32x16xf32>,
    return
  }
  func.func @transform_0(%arg0: i32) -> (i32, i32, i32) {
    %c0_i32 = arith.constant 0 : i32
    %c0_i32_0 = arith.constant 0 : i32
    %c0_i32_1 = arith.constant 0 : i32
    return %arg0, %c0_i32, %c0_i32_0 : i32, i32, i32
  }
  func.func @transform_1(%arg0: i32) -> (i32, i32) {
    %c0_i32 = arith.constant 0 : i32
    %c0_i32_0 = arith.constant 0 : i32
    %c0_i32_1 = arith.constant 0 : i32
    return %c0_i32, %c0_i32_0 : i32, i32
  }
  func.func @transform_2(%arg0: i32) -> (i32, i32) {
    %c0_i32 = arith.constant 0 : i32
    %c0_i32_0 = arith.constant 0 : i32
    %c0_i32_1 = arith.constant 0 : i32
    return %c0_i32, %c0_i32_0 : i32, i32
  }
  func.func @transform_3(%arg0: i32) -> (i32, i32) {
    %c0_i32 = arith.constant 0 : i32
    %c0_i32_0 = arith.constant 0 : i32
    %c0_i32_1 = arith.constant 0 : i32
    return %c0_i32, %c0_i32_0 : i32, i32
  }
  func.func @transform_4(%arg0: i32) -> (i32, i32) {
    %c0_i32 = arith.constant 0 : i32
    %c0_i32_0 = arith.constant 0 : i32
    %c0_i32_1 = arith.constant 0 : i32
    return %c0_i32, %c0_i32_0 : i32, i32
  }
  func.func @transform_5(%arg0: i32) -> (i32, i32) {
    %c0_i32 = arith.constant 0 : i32
    %c0_i32_0 = arith.constant 0 : i32
    %c0_i32_1 = arith.constant 0 : i32
    return %c0_i32, %c0_i32_0 : i32, i32
  }
  func.func @transform_6(%arg0: i32) -> (i32, i32) {
    %c0_i32 = arith.constant 0 : i32
    %c0_i32_0 = arith.constant 0 : i32
    %c0_i32_1 = arith.constant 0 : i32
    return %c0_i32, %c0_i32_0 : i32, i32
  }
  func.func @transform_7(%arg0: i32) -> (i32, i32, i32) {
    %c0_i32 = arith.constant 0 : i32
    %c0_i32_0 = arith.constant 0 : i32
    %c0_i32_1 = arith.constant 0 : i32
    return %arg0, %c0_i32, %c0_i32_0 : i32, i32, i32
  }
}

</mosaic_0001>

<llo_original>
// kernel: tpu_custom_call.1
$region0: #{tpu_custom_call.1}
  #allocation0 [shape = 'u32[]', space=smem, size = 0x4, offset = 0x4, fixed_abs, tag = 'smem constant byte address 0x4 - core index']
  #allocation1 [shape = 'u32[72,128]{1,0:T(1,128)}', space=vmem, size = 0x9000, scoped, tag = 'internal scratch']
  %s0 = inlined_call_operand.vmem [shape: f32[2,32,16], index: 0, kind: input, shape index: {}]
  %s1 = inlined_call_operand.vmem [shape: f32[32,32], index: 1, kind: input, shape index: {}]
  %s2 = inlined_call_operand.vmem [shape: f32[32,32], index: 2, kind: input, shape index: {}]
  %s3 = inlined_call_operand.vmem [shape: f32[32,32], index: 3, kind: input, shape index: {}]
  %s4 = inlined_call_operand.vmem [shape: f32[32,1], index: 4, kind: input, shape index: {}]
  %s5 = inlined_call_operand.vmem [shape: f32[32,1], index: 5, kind: input, shape index: {}]
  %s6 = inlined_call_operand.vmem [shape: f32[32,1], index: 6, kind: input, shape index: {}]
  %s7 = inlined_call_operand.vmem [shape: f32[2,32,16], index: 7, kind: output, shape index: {}]
  %s8 = sld [smem:[#allocation0]]
  $region61: #{tpu_custom_call.1} parent=0
    _
  %s10 = ssub.s32 1, %s8
  %s11 = scalar_select 0, %s10, %s8
  loop: start=0, step=1, limit=4
  $region2: #{tpu_custom_call.1} parent=0 // loop_pre_header
    _
  $region3: #{tpu_custom_call.1} parent=0 // loop_header
    %s13 = sphi 0, %s17
    %p14 = scmp.ge.s32.totalorder %s13, 4
    %s23 = sphi 0, %s25
    %s26 = sphi 0, %s23
    %s27 = sphi 0, %s26
    %s43 = sphi 0, %s27
    %s47 = sphi 0, %s47
    %s49 = sphi 0, %s47
    %s50 = sphi 0, %s49
    %s64 = sphi 0, %s50
    %s68 = sphi 0, %s68
    %s70 = sphi 0, %s68
    %s71 = sphi 0, %s70
    %s85 = sphi 0, %s71
    %s89 = sphi 0, %s89
    %s91 = sphi 0, %s89
    %s92 = sphi 0, %s91
    %s106 = sphi 0, %s92
    %s110 = sphi 0, %s110
    %s112 = sphi 0, %s110
    %s113 = sphi 0, %s112
    %s127 = sphi 0, %s113
    %s131 = sphi 0, %s131
    %s133 = sphi 0, %s131
    %s134 = sphi 0, %s133
    %s148 = sphi 0, %s134
    %s152 = sphi 0, %s152
    %s154 = sphi 0, %s152
    %s155 = sphi 0, %s154
    %s169 = sphi 0, %s155
    %s175 = sphi 0, %s177
    %s178 = sphi 0, %s175
    %s179 = sphi 0, %s178
    %s195 = sphi 0, %s179
  $region4: #{tpu_custom_call.1} parent=0 // loop_header_branch
    %16 = sbr.rel (%p14) target = $region8
  $region5: #{tpu_custom_call.1} parent=0 // loop_body
    %s18 = ssub.s32 %s13, 1
    %s19 = ssub.s32 %s13, 2
    %s20 = sadd.s32 %s13, 1
    %s21 = ssub.s32 %s13, %s20
    %p22 = scmp.eq.s32.totalorder %s21, 0
    %s24 = sadd.s32 %s23, 1
    %s25 = scalar_select %p22, %s23, %s24
    %p28 = pneg %p22
    %p29 = scmp.eq.s32.totalorder %s13, 1
    %p30 = por %p28, %p29
    %p31 = scmp.ne.s32.totalorder %s23, %s26
    %p32 = scmp.eq.s32.totalorder %s13, 0
    %p33 = por %p31, %p32
    %p34 = scmp.ne.s32.totalorder %s23, %s26
    %p35 = scmp.eq.s32.totalorder %s18, 1
    %p36 = por %p34, %p35
    %p37 = scmp.ne.s32.totalorder %s26, %s27
    %p38 = scmp.eq.s32.totalorder %s18, 0
    %p39 = por %p37, %p38
    %p40 = scmp.ne.s32.totalorder %s26, %s27
    %p41 = scmp.eq.s32.totalorder %s19, 1
    %p42 = por %p40, %p41
    %p44 = scmp.ne.s32.totalorder %s27, %s43
    %p45 = scmp.eq.s32.totalorder %s19, 0
    %p46 = por %p44, %p45
    %s48 = sadd.s32 %s47, 1
    %p51 = scmp.eq.s32.totalorder %s13, 1
    %p52 = scmp.ne.s32.totalorder %s47, %s49
    %p53 = scmp.eq.s32.totalorder %s13, 0
    %p54 = por %p52, %p53
    %p55 = scmp.ne.s32.totalorder %s47, %s49
    %p56 = scmp.eq.s32.totalorder %s18, 1
    %p57 = por %p55, %p56
    %p58 = scmp.ne.s32.totalorder %s49, %s50
    %p59 = scmp.eq.s32.totalorder %s18, 0
    %p60 = por %p58, %p59
    %p61 = scmp.ne.s32.totalorder %s49, %s50
    %p62 = scmp.eq.s32.totalorder %s19, 1
    %p63 = por %p61, %p62
    %p65 = scmp.ne.s32.totalorder %s50, %s64
    %p66 = scmp.eq.s32.totalorder %s19, 0
    %p67 = por %p65, %p66
    %s69 = sadd.s32 %s68, 1
    %p72 = scmp.eq.s32.totalorder %s13, 1
    %p73 = scmp.ne.s32.totalorder %s68, %s70
    %p74 = scmp.eq.s32.totalorder %s13, 0
    %p75 = por %p73, %p74
    %p76 = scmp.ne.s32.totalorder %s68, %s70
    %p77 = scmp.eq.s32.totalorder %s18, 1
    %p78 = por %p76, %p77
    %p79 = scmp.ne.s32.totalorder %s70, %s71
    %p80 = scmp.eq.s32.totalorder %s18, 0
    %p81 = por %p79, %p80
    %p82 = scmp.ne.s32.totalorder %s70, %s71
    %p83 = scmp.eq.s32.totalorder %s19, 1
    %p84 = por %p82, %p83
    %p86 = scmp.ne.s32.totalorder %s71, %s85
    %p87 = scmp.eq.s32.totalorder %s19, 0
    %p88 = por %p86, %p87
    %s90 = sadd.s32 %s89, 1
    %p93 = scmp.eq.s32.totalorder %s13, 1
    %p94 = scmp.ne.s32.totalorder %s89, %s91
    %p95 = scmp.eq.s32.totalorder %s13, 0
    %p96 = por %p94, %p95
    %p97 = scmp.ne.s32.totalorder %s89, %s91
    %p98 = scmp.eq.s32.totalorder %s18, 1
    %p99 = por %p97, %p98
    %p100 = scmp.ne.s32.totalorder %s91, %s92
    %p101 = scmp.eq.s32.totalorder %s18, 0
    %p102 = por %p100, %p101
    %p103 = scmp.ne.s32.totalorder %s91, %s92
    %p104 = scmp.eq.s32.totalorder %s19, 1
    %p105 = por %p103, %p104
    %p107 = scmp.ne.s32.totalorder %s92, %s106
    %p108 = scmp.eq.s32.totalorder %s19, 0
    %p109 = por %p107, %p108
    %s111 = sadd.s32 %s110, 1
    %p114 = scmp.eq.s32.totalorder %s13, 1
    %p115 = scmp.ne.s32.totalorder %s110, %s112
    %p116 = scmp.eq.s32.totalorder %s13, 0
    %p117 = por %p115, %p116
    %p118 = scmp.ne.s32.totalorder %s110, %s112
    %p119 = scmp.eq.s32.totalorder %s18, 1
    %p120 = por %p118, %p119
    %p121 = scmp.ne.s32.totalorder %s112, %s113
    %p122 = scmp.eq.s32.totalorder %s18, 0
    %p123 = por %p121, %p122
    %p124 = scmp.ne.s32.totalorder %s112, %s113
    %p125 = scmp.eq.s32.totalorder %s19, 1
    %p126 = por %p124, %p125
    %p128 = scmp.ne.s32.totalorder %s113, %s127
    %p129 = scmp.eq.s32.totalorder %s19, 0
    %p130 = por %p128, %p129
    %s132 = sadd.s32 %s131, 1
    %p135 = scmp.eq.s32.totalorder %s13, 1
    %p136 = scmp.ne.s32.totalorder %s131, %s133
    %p137 = scmp.eq.s32.totalorder %s13, 0
    %p138 = por %p136, %p137
    %p139 = scmp.ne.s32.totalorder %s131, %s133
    %p140 = scmp.eq.s32.totalorder %s18, 1
    %p141 = por %p139, %p140
    %p142 = scmp.ne.s32.totalorder %s133, %s134
    %p143 = scmp.eq.s32.totalorder %s18, 0
    %p144 = por %p142, %p143
    %p145 = scmp.ne.s32.totalorder %s133, %s134
    %p146 = scmp.eq.s32.totalorder %s19, 1
    %p147 = por %p145, %p146
    %p149 = scmp.ne.s32.totalorder %s134, %s148
    %p150 = scmp.eq.s32.totalorder %s19, 0
    %p151 = por %p149, %p150
    %s153 = sadd.s32 %s152, 1
    %p156 = scmp.eq.s32.totalorder %s13, 1
    %p157 = scmp.ne.s32.totalorder %s152, %s154
    %p158 = scmp.eq.s32.totalorder %s13, 0
    %p159 = por %p157, %p158
    %p160 = scmp.ne.s32.totalorder %s152, %s154
    %p161 = scmp.eq.s32.totalorder %s18, 1
    %p162 = por %p160, %p161
    %p163 = scmp.ne.s32.totalorder %s154, %s155
    %p164 = scmp.eq.s32.totalorder %s18, 0
    %p165 = por %p163, %p164
    %p166 = scmp.ne.s32.totalorder %s154, %s155
    %p167 = scmp.eq.s32.totalorder %s19, 1
    %p168 = por %p166, %p167
    %p170 = scmp.ne.s32.totalorder %s155, %s169
    %p171 = scmp.eq.s32.totalorder %s19, 0
    %p172 = por %p170, %p171
    %s173 = ssub.s32 %s13, %s20
    %p174 = scmp.eq.s32.totalorder %s173, 0
    %s176 = sadd.s32 %s175, 1
    %s177 = scalar_select %p174, %s175, %s176
    %p180 = pneg %p174
    %p181 = scmp.eq.s32.totalorder %s13, 1
    %p182 = por %p180, %p181
    %p183 = scmp.ne.s32.totalorder %s175, %s178
    %p184 = scmp.eq.s32.totalorder %s13, 0
    %p185 = por %p183, %p184
    %p186 = scmp.ne.s32.totalorder %s175, %s178
    %p187 = scmp.eq.s32.totalorder %s18, 1
    %p188 = por %p186, %p187
    %p189 = scmp.ne.s32.totalorder %s178, %s179
    %p190 = scmp.eq.s32.totalorder %s18, 0
    %p191 = por %p189, %p190
    %p192 = scmp.ne.s32.totalorder %s178, %s179
    %p193 = scmp.eq.s32.totalorder %s19, 1
    %p194 = por %p192, %p193
    %p196 = scmp.ne.s32.totalorder %s179, %s195
    %p197 = scmp.eq.s32.totalorder %s19, 0
    %p198 = por %p196, %p197
    %p199 = scmp.le.s32.totalorder 1, %s13
    %p200 = scmp.lt.s32.totalorder %s13, 3
    %p201 = pnand %p199, %p200
    %p202 = pneg %p201
    // Predicated region
    $region9: #{tpu_custom_call.1} parent=5 // pred_check
      _
    $region10: #{tpu_custom_call.1} parent=5 // pred_check_branch
      %204 = sbr.rel (%p201) target = $region12
    $region11: #{tpu_custom_call.1} parent=5 // pred_region
      %s205 = ssub.s32 %s13, 1
      // Predicated region
      $region13: #{tpu_custom_call.1} parent=11 // pred_check
        %p206 = pneg %p60
      $region14: #{tpu_custom_call.1} parent=11 // pred_check_branch
        %208 = sbr.rel (%p206) target = $region16
      $region15: #{tpu_custom_call.1} parent=11 // pred_region
        _
      $region16: #{tpu_custom_call.1} parent=11 // pred_fallthru
        _
      // Predicated region
      $region17: #{tpu_custom_call.1} parent=11 // pred_check
        %p209 = pneg %p81
      $region18: #{tpu_custom_call.1} parent=11 // pred_check_branch
        %211 = sbr.rel (%p209) target = $region20
      $region19: #{tpu_custom_call.1} parent=11 // pred_region
        _
      $region20: #{tpu_custom_call.1} parent=11 // pred_fallthru
        _
      // Predicated region
      $region21: #{tpu_custom_call.1} parent=11 // pred_check
        %p212 = pneg %p102
      $region22: #{tpu_custom_call.1} parent=11 // pred_check_branch
        %214 = sbr.rel (%p212) target = $region24
      $region23: #{tpu_custom_call.1} parent=11 // pred_region
        _
      $region24: #{tpu_custom_call.1} parent=11 // pred_fallthru
        _
      // Predicated region
      $region25: #{tpu_custom_call.1} parent=11 // pred_check
        %p215 = pneg %p123
      $region26: #{tpu_custom_call.1} parent=11 // pred_check_branch
        %217 = sbr.rel (%p215) target = $region28
      $region27: #{tpu_custom_call.1} parent=11 // pred_region
        _
      $region28: #{tpu_custom_call.1} parent=11 // pred_fallthru
        _
      // Predicated region
      $region29: #{tpu_custom_call.1} parent=11 // pred_check
        %p218 = pneg %p144
      $region30: #{tpu_custom_call.1} parent=11 // pred_check_branch
        %220 = sbr.rel (%p218) target = $region32
      $region31: #{tpu_custom_call.1} parent=11 // pred_region
        _
      $region32: #{tpu_custom_call.1} parent=11 // pred_fallthru
        _
      // Predicated region
      $region33: #{tpu_custom_call.1} parent=11 // pred_check
        %p221 = pneg %p165
      $region34: #{tpu_custom_call.1} parent=11 // pred_check_branch
        %223 = sbr.rel (%p221) target = $region36
      $region35: #{tpu_custom_call.1} parent=11 // pred_region
        _
      $region36: #{tpu_custom_call.1} parent=11 // pred_fallthru
        _
    $region12: #{tpu_custom_call.1} parent=5 // pred_fallthru
      _
    %p224 = scmp.lt.s32.totalorder %s13, 2
    // Predicated region
    $region37: #{tpu_custom_call.1} parent=5 // pred_check
      %p225 = pneg %p224
    $region38: #{tpu_custom_call.1} parent=5 // pred_check_branch
      %227 = sbr.rel (%p225) target = $region40
    $region39: #{tpu_custom_call.1} parent=5 // pred_region
      // Predicated region
      $region41: #{tpu_custom_call.1} parent=39 // pred_check
        %p228 = pneg %p33
      $region42: #{tpu_custom_call.1} parent=39 // pred_check_branch
        %230 = sbr.rel (%p228) target = $region44
      $region43: #{tpu_custom_call.1} parent=39 // pred_region
        %p231 = scmp.lt.s32.totalorder %s13, 1
        %s232 = scalar_select %p231, %s13, 1
        %s233 = smul.addr %s232, 4
        %s234 = smul.addr %s233, 8
        %s235 = scalar_lea.vmem %s0, %s234
      $region44: #{tpu_custom_call.1} parent=39 // pred_fallthru
        _
    $region40: #{tpu_custom_call.1} parent=5 // pred_fallthru
      _
    %p236 = scmp.le.s32.totalorder 1, %s13
    %p237 = scmp.lt.s32.totalorder %s13, 3
    %p238 = pnand %p236, %p237
    %p239 = pneg %p238
    // Predicated region
    $region45: #{tpu_custom_call.1} parent=5 // pred_check
      _
    $region46: #{tpu_custom_call.1} parent=5 // pred_check_branch
      %241 = sbr.rel (%p238) target = $region48
    $region47: #{tpu_custom_call.1} parent=5 // pred_region
      %s242 = ssub.s32 %s13, 1
      %p243 = scmp.lt.s32.totalorder %s18, 1
      %s244 = scalar_select %p243, %s18, 1
      %s245 = smul.addr %s244, 4
      %s246 = smul.addr %s245, 8
      %s247 = scalar_lea.vmem %s0, %s246
      %p248 = pneg %p39
      %p249 = pneg %p36
      %p250 = pneg %p60
      %p251 = pneg %p57
      %p252 = pneg %p81
      %p253 = pneg %p78
      %p254 = pneg %p102
      %p255 = pneg %p99
      %p256 = pneg %p123
      %p257 = pneg %p120
      %p258 = pneg %p144
      %p259 = pneg %p141
      %p260 = pneg %p165
      %p261 = pneg %p162
      %p262 = pneg %p191
      %p263 = pneg %p188
      %p264 = scmp.lt.s32.totalorder %s18, 1
      %s265 = scalar_select %p264, %s18, 1
      %s266 = smul.addr %s265, 4
      %s267 = smul.addr %s266, 8
      %s268 = scalar_lea.vmem %s7, %s267
      %p269 = scmp.lt.s32.totalorder %s18, 1
      %s270 = scalar_select %p269, %s18, 1
      %s271 = smul.addr %s270, 4
      %s272 = smul.addr %s271, 8
      %s273 = scalar_lea.vmem %s0, %s272
      %p274 = scmp.lt.s32.totalorder %s18, 1
      %s275 = scalar_select %p274, %s18, 1
      %s276 = smul.addr %s275, 4
      %s277 = smul.addr %s276, 8
      %s278 = scalar_lea.vmem %s7, %s277
      %v279 = vld [vmem:[%s273] sm:$0xff]
      %v280 = vld [vmem:[%s273 + $0x8] sm:$0xff]
      %v281 = vld [vmem:[%s273 + $0x10] sm:$0xff]
      %v282 = vld [vmem:[%s273 + $0x18] sm:$0xff]
      %v283 = vld [vmem:[%s1] sm:$0xff]
      %v284 = vld [vmem:[%s1 + $0x8] sm:$0xff]
      %v285 = vld [vmem:[%s1 + $0x10] sm:$0xff]
      %v286 = vld [vmem:[%s1 + $0x18] sm:$0xff]
      %v287 = vld [vmem:[%s2] sm:$0xff]
      %v288 = vld [vmem:[%s2 + $0x8] sm:$0xff]
      %v289 = vld [vmem:[%s2 + $0x10] sm:$0xff]
      %v290 = vld [vmem:[%s2 + $0x18] sm:$0xff]
      %v291 = vld [vmem:[%s3] sm:$0xff]
      %v292 = vld [vmem:[%s3 + $0x8] sm:$0xff]
      %v293 = vld [vmem:[%s3 + $0x10] sm:$0xff]
      %v294 = vld [vmem:[%s3 + $0x18] sm:$0xff]
      %v295 = vld [vmem:[%s4] sm:$0xff]
      %v296 = vld [vmem:[%s4 + $0x8] sm:$0xff]
      %v297 = vld [vmem:[%s4 + $0x10] sm:$0xff]
      %v298 = vld [vmem:[%s4 + $0x18] sm:$0xff]
      %v299 = vld [vmem:[%s5] sm:$0xff]
      %v300 = vld [vmem:[%s5 + $0x8] sm:$0xff]
      %v301 = vld [vmem:[%s5 + $0x10] sm:$0xff]
      %v302 = vld [vmem:[%s5 + $0x18] sm:$0xff]
      %v303 = vld [vmem:[%s6] sm:$0xff]
      %v304 = vld [vmem:[%s6 + $0x8] sm:$0xff]
      %v305 = vld [vmem:[%s6 + $0x10] sm:$0xff]
      %v306 = vld [vmem:[%s6 + $0x18] sm:$0xff]
      %308 = vset.pattern.permute.xlu0 0
      %309 = vperm.xlu0 %308, %v295
      %v310 = vpop.permute.xlu0 %309
      %313 = vset.pattern.permute.xlu0 0
      %314 = vperm.xlu0 %313, %v296
      %v315 = vpop.permute.xlu0 %314
      %318 = vset.pattern.permute.xlu0 0
      %319 = vperm.xlu0 %318, %v297
      %v320 = vpop.permute.xlu0 %319
      %323 = vset.pattern.permute.xlu0 0
      %324 = vperm.xlu0 %323, %v298
      %v325 = vpop.permute.xlu0 %324
      %vm327 = vcmask 261120
      %v329 = vsel %vm327, %v283, 0
      %v332 = vsel %vm327, %v284, 0
      %v335 = vsel %vm327, %v285, 0
      %v338 = vsel %vm327, %v286, 0
      %340 = vmatpush.msra.mxu0 0.0
      %341 = vmatpush.msra.mxu0 0.0
      %342 = vmatpush.msra.mxu0 0.0
      %343 = vmatpush.msra.mxu0 0.0
      %344 = vmatpush.msra.mxu0 0.0
      %345 = vmatpush.msra.mxu0 0.0
      %346 = vmatpush.msra.mxu0 0.0
      %347 = vmatpush.msra.mxu0 0.0
      %348 = vmatpush.msra.mxu0 0.0
      %349 = vmatpush.msra.mxu0 0.0
      %350 = vmatpush.msra.mxu0 0.0
      %351 = vmatpush.msra.mxu0 0.0
      %v352 = vand.u32 %v282, 4294901760
      %353 = vmatpush.msra.mxu0 %v352
      %v354 = vand.u32 %v281, 4294901760
      %355 = vmatpush.msra.mxu0 %v354
      %v356 = vand.u32 %v280, 4294901760
      %357 = vmatpush.msra.mxu0 %v356
      %v358 = vand.u32 %v279, 4294901760
      %359 = vmatpush.msra.mxu0 %v358
      %v360 = vand.u32 %v329, 4294901760
      %v361 = vsub.f32 %v329, %v360
      %v362 = vand.u32 %v361, 4294901760
      %v363 = vsub.f32 %v361, %v362
      %v364 = vand.u32 %v363, 4294901760
      %365 = vmatmul.f32.gmra.mxu0 %v364
      %v366 = vpop.f32.mrf.mxu0
      %v367 = vadd.f32 %v310, %v366
      %v368 = vand.u32 %v332, 4294901760
      %v369 = vsub.f32 %v332, %v368
      %v370 = vand.u32 %v369, 4294901760
      %v371 = vsub.f32 %v369, %v370
      %v372 = vand.u32 %v371, 4294901760
      %373 = vmatmul.f32.gmra.mxu0 %v372
      %v374 = vpop.f32.mrf.mxu0
      %v375 = vadd.f32 %v315, %v374
      %v376 = vand.u32 %v335, 4294901760
      %v377 = vsub.f32 %v335, %v376
      %v378 = vand.u32 %v377, 4294901760
      %v379 = vsub.f32 %v377, %v378
      %v380 = vand.u32 %v379, 4294901760
      %381 = vmatmul.f32.gmra.mxu0 %v380
      %v382 = vpop.f32.mrf.mxu0
      %v383 = vadd.f32 %v320, %v382
      %v384 = vand.u32 %v338, 4294901760
      %v385 = vsub.f32 %v338, %v384
      %v386 = vand.u32 %v385, 4294901760
      %v387 = vsub.f32 %v385, %v386
      %v388 = vand.u32 %v387, 4294901760
      %389 = vmatmul.f32.gmra.mxu0 %v388
      %v390 = vpop.f32.mrf.mxu0
      %v391 = vadd.f32 %v325, %v390
      %392 = vdwg.mxu0
      %393 = vmatpush.msra.mxu0 0.0
      %394 = vmatpush.msra.mxu0 0.0
      %395 = vmatpush.msra.mxu0 0.0
      %396 = vmatpush.msra.mxu0 0.0
      %397 = vmatpush.msra.mxu0 0.0
      %398 = vmatpush.msra.mxu0 0.0
      %399 = vmatpush.msra.mxu0 0.0
      %400 = vmatpush.msra.mxu0 0.0
      %401 = vmatpush.msra.mxu0 0.0
      %402 = vmatpush.msra.mxu0 0.0
      %403 = vmatpush.msra.mxu0 0.0
      %404 = vmatpush.msra.mxu0 0.0
      %v405 = vand.u32 %v282, 4294901760
      %v406 = vsub.f32 %v282, %v405
      %v407 = vand.u32 %v406, 4294901760
      %v408 = vsub.f32 %v406, %v407
      %v409 = vand.u32 %v408, 4294901760
      %410 = vmatpush.msra.mxu0 %v409
      %v411 = vand.u32 %v281, 4294901760
      %v412 = vsub.f32 %v281, %v411
      %v413 = vand.u32 %v412, 4294901760
      %v414 = vsub.f32 %v412, %v413
      %v415 = vand.u32 %v414, 4294901760
      %416 = vmatpush.msra.mxu0 %v415
      %v417 = vand.u32 %v280, 4294901760
      %v418 = vsub.f32 %v280, %v417
      %v419 = vand.u32 %v418, 4294901760
      %v420 = vsub.f32 %v418, %v419
      %v421 = vand.u32 %v420, 4294901760
      %422 = vmatpush.msra.mxu0 %v421
      %v423 = vand.u32 %v279, 4294901760
      %v424 = vsub.f32 %v279, %v423
      %v425 = vand.u32 %v424, 4294901760
      %v426 = vsub.f32 %v424, %v425
      %v427 = vand.u32 %v426, 4294901760
      %428 = vmatpush.msra.mxu0 %v427
      %v429 = vand.u32 %v329, 4294901760
      %430 = vmatmul.f32.gmra.mxu0 %v429
      %v431 = vpop.f32.mrf.mxu0
      %v432 = vadd.f32 %v367, %v431
      %v433 = vand.u32 %v332, 4294901760
      %434 = vmatmul.f32.gmra.mxu0 %v433
      %v435 = vpop.f32.mrf.mxu0
      %v436 = vadd.f32 %v375, %v435
      %v437 = vand.u32 %v335, 4294901760
      %438 = vmatmul.f32.gmra.mxu0 %v437
      %v439 = vpop.f32.mrf.mxu0
      %v440 = vadd.f32 %v383, %v439
      %v441 = vand.u32 %v338, 4294901760
      %442 = vmatmul.f32.gmra.mxu0 %v441
      %v443 = vpop.f32.mrf.mxu0
      %v444 = vadd.f32 %v391, %v443
      %445 = vdwg.mxu0
      %446 = vmatpush.msra.mxu0 0.0
      %447 = vmatpush.msra.mxu0 0.0
      %448 = vmatpush.msra.mxu0 0.0
      %449 = vmatpush.msra.mxu0 0.0
      %450 = vmatpush.msra.mxu0 0.0
      %451 = vmatpush.msra.mxu0 0.0
      %452 = vmatpush.msra.mxu0 0.0
      %453 = vmatpush.msra.mxu0 0.0
      %454 = vmatpush.msra.mxu0 0.0
      %455 = vmatpush.msra.mxu0 0.0
      %456 = vmatpush.msra.mxu0 0.0
      %457 = vmatpush.msra.mxu0 0.0
      %v458 = vand.u32 %v282, 4294901760
      %v459 = vsub.f32 %v282, %v458
      %460 = vmatpush.msra.mxu0 %v459
      %v461 = vand.u32 %v281, 4294901760
      %v462 = vsub.f32 %v281, %v461
      %463 = vmatpush.msra.mxu0 %v462
      %v464 = vand.u32 %v280, 4294901760
      %v465 = vsub.f32 %v280, %v464
      %466 = vmatpush.msra.mxu0 %v465
      %v467 = vand.u32 %v279, 4294901760
      %v468 = vsub.f32 %v279, %v467
      %469 = vmatpush.msra.mxu0 %v468
      %v470 = vand.u32 %v329, 4294901760
      %v471 = vsub.f32 %v329, %v470
      %472 = vmatmul.f32.gmra.mxu0 %v471
      %v473 = vpop.f32.mrf.mxu0
      %v474 = vadd.f32 %v432, %v473
      %v475 = vand.u32 %v332, 4294901760
      %v476 = vsub.f32 %v332, %v475
      %477 = vmatmul.f32.gmra.mxu0 %v476
      %v478 = vpop.f32.mrf.mxu0
      %v479 = vadd.f32 %v436, %v478
      %v480 = vand.u32 %v335, 4294901760
      %v481 = vsub.f32 %v335, %v480
      %482 = vmatmul.f32.gmra.mxu0 %v481
      %v483 = vpop.f32.mrf.mxu0
      %v484 = vadd.f32 %v440, %v483
      %v485 = vand.u32 %v338, 4294901760
      %v486 = vsub.f32 %v338, %v485
      %487 = vmatmul.f32.gmra.mxu0 %v486
      %v488 = vpop.f32.mrf.mxu0
      %v489 = vadd.f32 %v444, %v488
      %490 = vdwg.mxu0
      %491 = vmatpush.msra.mxu0 0.0
      %492 = vmatpush.msra.mxu0 0.0
      %493 = vmatpush.msra.mxu0 0.0
      %494 = vmatpush.msra.mxu0 0.0
      %495 = vmatpush.msra.mxu0 0.0
      %496 = vmatpush.msra.mxu0 0.0
      %497 = vmatpush.msra.mxu0 0.0
      %498 = vmatpush.msra.mxu0 0.0
      %499 = vmatpush.msra.mxu0 0.0
      %500 = vmatpush.msra.mxu0 0.0
      %501 = vmatpush.msra.mxu0 0.0
      %502 = vmatpush.msra.mxu0 0.0
      %v503 = vand.u32 %v282, 4294901760
      %504 = vmatpush.msra.mxu0 %v503
      %v505 = vand.u32 %v281, 4294901760
      %506 = vmatpush.msra.mxu0 %v505
      %v507 = vand.u32 %v280, 4294901760
      %508 = vmatpush.msra.mxu0 %v507
      %v509 = vand.u32 %v279, 4294901760
      %510 = vmatpush.msra.mxu0 %v509
      %v511 = vand.u32 %v329, 4294901760
      %v512 = vsub.f32 %v329, %v511
      %v513 = vand.u32 %v512, 4294901760
      %514 = vmatmul.f32.gmra.mxu0 %v513
      %v515 = vpop.f32.mrf.mxu0
      %v516 = vadd.f32 %v474, %v515
      %v517 = vand.u32 %v332, 4294901760
      %v518 = vsub.f32 %v332, %v517
      %v519 = vand.u32 %v518, 4294901760
      %520 = vmatmul.f32.gmra.mxu0 %v519
      %v521 = vpop.f32.mrf.mxu0
      %v522 = vadd.f32 %v479, %v521
      %v523 = vand.u32 %v335, 4294901760
      %v524 = vsub.f32 %v335, %v523
      %v525 = vand.u32 %v524, 4294901760
      %526 = vmatmul.f32.gmra.mxu0 %v525
      %v527 = vpop.f32.mrf.mxu0
      %v528 = vadd.f32 %v484, %v527
      %v529 = vand.u32 %v338, 4294901760
      %v530 = vsub.f32 %v338, %v529
      %v531 = vand.u32 %v530, 4294901760
      %532 = vmatmul.f32.gmra.mxu0 %v531
      %v533 = vpop.f32.mrf.mxu0
      %v534 = vadd.f32 %v489, %v533
      %535 = vdwg.mxu0
      %536 = vmatpush.msra.mxu0 0.0
      %537 = vmatpush.msra.mxu0 0.0
      %538 = vmatpush.msra.mxu0 0.0
      %539 = vmatpush.msra.mxu0 0.0
      %540 = vmatpush.msra.mxu0 0.0
      %541 = vmatpush.msra.mxu0 0.0
      %542 = vmatpush.msra.mxu0 0.0
      %543 = vmatpush.msra.mxu0 0.0
      %544 = vmatpush.msra.mxu0 0.0
      %545 = vmatpush.msra.mxu0 0.0
      %546 = vmatpush.msra.mxu0 0.0
      %547 = vmatpush.msra.mxu0 0.0
      %v548 = vand.u32 %v282, 4294901760
      %v549 = vsub.f32 %v282, %v548
      %v550 = vand.u32 %v549, 4294901760
      %551 = vmatpush.msra.mxu0 %v550
      %v552 = vand.u32 %v281, 4294901760
      %v553 = vsub.f32 %v281, %v552
      %v554 = vand.u32 %v553, 4294901760
      %555 = vmatpush.msra.mxu0 %v554
      %v556 = vand.u32 %v280, 4294901760
      %v557 = vsub.f32 %v280, %v556
      %v558 = vand.u32 %v557, 4294901760
      %559 = vmatpush.msra.mxu0 %v558
      %v560 = vand.u32 %v279, 4294901760
      %v561 = vsub.f32 %v279, %v560
      %v562 = vand.u32 %v561, 4294901760
      %563 = vmatpush.msra.mxu0 %v562
      %v564 = vand.u32 %v329, 4294901760
      %565 = vmatmul.f32.gmra.mxu0 %v564
      %v566 = vpop.f32.mrf.mxu0
      %v567 = vadd.f32 %v516, %v566
      %v568 = vand.u32 %v332, 4294901760
      %569 = vmatmul.f32.gmra.mxu0 %v568
      %v570 = vpop.f32.mrf.mxu0
      %v571 = vadd.f32 %v522, %v570
      %v572 = vand.u32 %v335, 4294901760
      %573 = vmatmul.f32.gmra.mxu0 %v572
      %v574 = vpop.f32.mrf.mxu0
      %v575 = vadd.f32 %v528, %v574
      %v576 = vand.u32 %v338, 4294901760
      %577 = vmatmul.f32.gmra.mxu0 %v576
      %v578 = vpop.f32.mrf.mxu0
      %v579 = vadd.f32 %v534, %v578
      %580 = vdwg.mxu0
      %581 = vmatpush.msra.mxu0 0.0
      %582 = vmatpush.msra.mxu0 0.0
      %583 = vmatpush.msra.mxu0 0.0
      %584 = vmatpush.msra.mxu0 0.0
      %585 = vmatpush.msra.mxu0 0.0
      %586 = vmatpush.msra.mxu0 0.0
      %587 = vmatpush.msra.mxu0 0.0
      %588 = vmatpush.msra.mxu0 0.0
      %589 = vmatpush.msra.mxu0 0.0
      %590 = vmatpush.msra.mxu0 0.0
      %591 = vmatpush.msra.mxu0 0.0
      %592 = vmatpush.msra.mxu0 0.0
      %v593 = vand.u32 %v282, 4294901760
      %594 = vmatpush.msra.mxu0 %v593
      %v595 = vand.u32 %v281, 4294901760
      %596 = vmatpush.msra.mxu0 %v595
      %v597 = vand.u32 %v280, 4294901760
      %598 = vmatpush.msra.mxu0 %v597
      %v599 = vand.u32 %v279, 4294901760
      %600 = vmatpush.msra.mxu0 %v599
      %v601 = vand.u32 %v329, 4294901760
      %602 = vmatmul.f32.gmra.mxu0 %v601
      %v603 = vpop.f32.mrf.mxu0
      %v604 = vadd.f32 %v567, %v603
      %v605 = vand.u32 %v332, 4294901760
      %606 = vmatmul.f32.gmra.mxu0 %v605
      %v607 = vpop.f32.mrf.mxu0
      %v608 = vadd.f32 %v571, %v607
      %v609 = vand.u32 %v335, 4294901760
      %610 = vmatmul.f32.gmra.mxu0 %v609
      %v611 = vpop.f32.mrf.mxu0
      %v612 = vadd.f32 %v575, %v611
      %v613 = vand.u32 %v338, 4294901760
      %614 = vmatmul.f32.gmra.mxu0 %v613
      %v615 = vpop.f32.mrf.mxu0
      %v616 = vadd.f32 %v579, %v615
      %617 = vdwg.mxu0
      %619 = vset.pattern.permute.xlu0 0
      %620 = vperm.xlu0 %619, %v299
      %v621 = vpop.permute.xlu0 %620
      %624 = vset.pattern.permute.xlu0 0
      %625 = vperm.xlu0 %624, %v300
      %v626 = vpop.permute.xlu0 %625
      %629 = vset.pattern.permute.xlu0 0
      %630 = vperm.xlu0 %629, %v301
      %v631 = vpop.permute.xlu0 %630
      %634 = vset.pattern.permute.xlu0 0
      %635 = vperm.xlu0 %634, %v302
      %v636 = vpop.permute.xlu0 %635
      %v639 = vsel %vm327, %v287, 0
      %v642 = vsel %vm327, %v288, 0
      %v645 = vsel %vm327, %v289, 0
      %v648 = vsel %vm327, %v290, 0
      %650 = vmatpush.msra.mxu0 0.0
      %651 = vmatpush.msra.mxu0 0.0
      %652 = vmatpush.msra.mxu0 0.0
      %653 = vmatpush.msra.mxu0 0.0
      %654 = vmatpush.msra.mxu0 0.0
      %655 = vmatpush.msra.mxu0 0.0
      %656 = vmatpush.msra.mxu0 0.0
      %657 = vmatpush.msra.mxu0 0.0
      %658 = vmatpush.msra.mxu0 0.0
      %659 = vmatpush.msra.mxu0 0.0
      %660 = vmatpush.msra.mxu0 0.0
      %661 = vmatpush.msra.mxu0 0.0
      %v662 = vand.u32 %v282, 4294901760
      %663 = vmatpush.msra.mxu0 %v662
      %v664 = vand.u32 %v281, 4294901760
      %665 = vmatpush.msra.mxu0 %v664
      %v666 = vand.u32 %v280, 4294901760
      %667 = vmatpush.msra.mxu0 %v666
      %v668 = vand.u32 %v279, 4294901760
      %669 = vmatpush.msra.mxu0 %v668
      %v670 = vand.u32 %v639, 4294901760
      %v671 = vsub.f32 %v639, %v670
      %v672 = vand.u32 %v671, 4294901760
      %v673 = vsub.f32 %v671, %v672
      %v674 = vand.u32 %v673, 4294901760
      %675 = vmatmul.f32.gmra.mxu0 %v674
      %v676 = vpop.f32.mrf.mxu0
      %v677 = vadd.f32 %v621, %v676
      %v678 = vand.u32 %v642, 4294901760
      %v679 = vsub.f32 %v642, %v678
      %v680 = vand.u32 %v679, 4294901760
      %v681 = vsub.f32 %v679, %v680
      %v682 = vand.u32 %v681, 4294901760
      %683 = vmatmul.f32.gmra.mxu0 %v682
      %v684 = vpop.f32.mrf.mxu0
      %v685 = vadd.f32 %v626, %v684
      %v686 = vand.u32 %v645, 4294901760
      %v687 = vsub.f32 %v645, %v686
      %v688 = vand.u32 %v687, 4294901760
      %v689 = vsub.f32 %v687, %v688
      %v690 = vand.u32 %v689, 4294901760
      %691 = vmatmul.f32.gmra.mxu0 %v690
      %v692 = vpop.f32.mrf.mxu0
      %v693 = vadd.f32 %v631, %v692
      %v694 = vand.u32 %v648, 4294901760
      %v695 = vsub.f32 %v648, %v694
      %v696 = vand.u32 %v695, 4294901760
      %v697 = vsub.f32 %v695, %v696
      %v698 = vand.u32 %v697, 4294901760
      %699 = vmatmul.f32.gmra.mxu0 %v698
      %v700 = vpop.f32.mrf.mxu0
      %v701 = vadd.f32 %v636, %v700
      %702 = vdwg.mxu0
      %703 = vmatpush.msra.mxu0 0.0
      %704 = vmatpush.msra.mxu0 0.0
      %705 = vmatpush.msra.mxu0 0.0
      %706 = vmatpush.msra.mxu0 0.0
      %707 = vmatpush.msra.mxu0 0.0
      %708 = vmatpush.msra.mxu0 0.0
      %709 = vmatpush.msra.mxu0 0.0
      %710 = vmatpush.msra.mxu0 0.0
      %711 = vmatpush.msra.mxu0 0.0
      %712 = vmatpush.msra.mxu0 0.0
      %713 = vmatpush.msra.mxu0 0.0
      %714 = vmatpush.msra.mxu0 0.0
      %v715 = vand.u32 %v282, 4294901760
      %v716 = vsub.f32 %v282, %v715
      %v717 = vand.u32 %v716, 4294901760
      %v718 = vsub.f32 %v716, %v717
      %v719 = vand.u32 %v718, 4294901760
      %720 = vmatpush.msra.mxu0 %v719
      %v721 = vand.u32 %v281, 4294901760
      %v722 = vsub.f32 %v281, %v721
      %v723 = vand.u32 %v722, 4294901760
      %v724 = vsub.f32 %v722, %v723
      %v725 = vand.u32 %v724, 4294901760
      %726 = vmatpush.msra.mxu0 %v725
      %v727 = vand.u32 %v280, 4294901760
      %v728 = vsub.f32 %v280, %v727
      %v729 = vand.u32 %v728, 4294901760
      %v730 = vsub.f32 %v728, %v729
      %v731 = vand.u32 %v730, 4294901760
      %732 = vmatpush.msra.mxu0 %v731
      %v733 = vand.u32 %v279, 4294901760
      %v734 = vsub.f32 %v279, %v733
      %v735 = vand.u32 %v734, 4294901760
      %v736 = vsub.f32 %v734, %v735
      %v737 = vand.u32 %v736, 4294901760
      %738 = vmatpush.msra.mxu0 %v737
      %v739 = vand.u32 %v639, 4294901760
      %740 = vmatmul.f32.gmra.mxu0 %v739
      %v741 = vpop.f32.mrf.mxu0
      %v742 = vadd.f32 %v677, %v741
      %v743 = vand.u32 %v642, 4294901760
      %744 = vmatmul.f32.gmra.mxu0 %v743
      %v745 = vpop.f32.mrf.mxu0
      %v746 = vadd.f32 %v685, %v745
      %v747 = vand.u32 %v645, 4294901760
      %748 = vmatmul.f32.gmra.mxu0 %v747
      %v749 = vpop.f32.mrf.mxu0
      %v750 = vadd.f32 %v693, %v749
      %v751 = vand.u32 %v648, 4294901760
      %752 = vmatmul.f32.gmra.mxu0 %v751
      %v753 = vpop.f32.mrf.mxu0
      %v754 = vadd.f32 %v701, %v753
      %755 = vdwg.mxu0
      %756 = vmatpush.msra.mxu0 0.0
      %757 = vmatpush.msra.mxu0 0.0
      %758 = vmatpush.msra.mxu0 0.0
      %759 = vmatpush.msra.mxu0 0.0
      %760 = vmatpush.msra.mxu0 0.0
      %761 = vmatpush.msra.mxu0 0.0
      %762 = vmatpush.msra.mxu0 0.0
      %763 = vmatpush.msra.mxu0 0.0
      %764 = vmatpush.msra.mxu0 0.0
      %765 = vmatpush.msra.mxu0 0.0
      %766 = vmatpush.msra.mxu0 0.0
      %767 = vmatpush.msra.mxu0 0.0
      %v768 = vand.u32 %v282, 4294901760
      %v769 = vsub.f32 %v282, %v768
      %770 = vmatpush.msra.mxu0 %v769
      %v771 = vand.u32 %v281, 4294901760
      %v772 = vsub.f32 %v281, %v771
      %773 = vmatpush.msra.mxu0 %v772
      %v774 = vand.u32 %v280, 4294901760
      %v775 = vsub.f32 %v280, %v774
      %776 = vmatpush.msra.mxu0 %v775
      %v777 = vand.u32 %v279, 4294901760
      %v778 = vsub.f32 %v279, %v777
      %779 = vmatpush.msra.mxu0 %v778
      %v780 = vand.u32 %v639, 4294901760
      %v781 = vsub.f32 %v639, %v780
      %782 = vmatmul.f32.gmra.mxu0 %v781
      %v783 = vpop.f32.mrf.mxu0
      %v784 = vadd.f32 %v742, %v783
      %v785 = vand.u32 %v642, 4294901760
      %v786 = vsub.f32 %v642, %v785
      %787 = vmatmul.f32.gmra.mxu0 %v786
      %v788 = vpop.f32.mrf.mxu0
      %v789 = vadd.f32 %v746, %v788
      %v790 = vand.u32 %v645, 4294901760
      %v791 = vsub.f32 %v645, %v790
      %792 = vmatmul.f32.gmra.mxu0 %v791
      %v793 = vpop.f32.mrf.mxu0
      %v794 = vadd.f32 %v750, %v793
      %v795 = vand.u32 %v648, 4294901760
      %v796 = vsub.f32 %v648, %v795
      %797 = vmatmul.f32.gmra.mxu0 %v796
      %v798 = vpop.f32.mrf.mxu0
      %v799 = vadd.f32 %v754, %v798
      %800 = vdwg.mxu0
      %801 = vmatpush.msra.mxu0 0.0
      %802 = vmatpush.msra.mxu0 0.0
      %803 = vmatpush.msra.mxu0 0.0
      %804 = vmatpush.msra.mxu0 0.0
      %805 = vmatpush.msra.mxu0 0.0
      %806 = vmatpush.msra.mxu0 0.0
      %807 = vmatpush.msra.mxu0 0.0
      %808 = vmatpush.msra.mxu0 0.0
      %809 = vmatpush.msra.mxu0 0.0
      %810 = vmatpush.msra.mxu0 0.0
      %811 = vmatpush.msra.mxu0 0.0
      %812 = vmatpush.msra.mxu0 0.0
      %v813 = vand.u32 %v282, 4294901760
      %814 = vmatpush.msra.mxu0 %v813
      %v815 = vand.u32 %v281, 4294901760
      %816 = vmatpush.msra.mxu0 %v815
      %v817 = vand.u32 %v280, 4294901760
      %818 = vmatpush.msra.mxu0 %v817
      %v819 = vand.u32 %v279, 4294901760
      %820 = vmatpush.msra.mxu0 %v819
      %v821 = vand.u32 %v639, 4294901760
      %v822 = vsub.f32 %v639, %v821
      %v823 = vand.u32 %v822, 4294901760
      %824 = vmatmul.f32.gmra.mxu0 %v823
      %v825 = vpop.f32.mrf.mxu0
      %v826 = vadd.f32 %v784, %v825
      %v827 = vand.u32 %v642, 4294901760
      %v828 = vsub.f32 %v642, %v827
      %v829 = vand.u32 %v828, 4294901760
      %830 = vmatmul.f32.gmra.mxu0 %v829
      %v831 = vpop.f32.mrf.mxu0
      %v832 = vadd.f32 %v789, %v831
      %v833 = vand.u32 %v645, 4294901760
      %v834 = vsub.f32 %v645, %v833
      %v835 = vand.u32 %v834, 4294901760
      %836 = vmatmul.f32.gmra.mxu0 %v835
      %v837 = vpop.f32.mrf.mxu0
      %v838 = vadd.f32 %v794, %v837
      %v839 = vand.u32 %v648, 4294901760
      %v840 = vsub.f32 %v648, %v839
      %v841 = vand.u32 %v840, 4294901760
      %842 = vmatmul.f32.gmra.mxu0 %v841
      %v843 = vpop.f32.mrf.mxu0
      %v844 = vadd.f32 %v799, %v843
      %845 = vdwg.mxu0
      %846 = vmatpush.msra.mxu0 0.0
      %847 = vmatpush.msra.mxu0 0.0
      %848 = vmatpush.msra.mxu0 0.0
      %849 = vmatpush.msra.mxu0 0.0
      %850 = vmatpush.msra.mxu0 0.0
      %851 = vmatpush.msra.mxu0 0.0
      %852 = vmatpush.msra.mxu0 0.0
      %853 = vmatpush.msra.mxu0 0.0
      %854 = vmatpush.msra.mxu0 0.0
      %855 = vmatpush.msra.mxu0 0.0
      %856 = vmatpush.msra.mxu0 0.0
      %857 = vmatpush.msra.mxu0 0.0
      %v858 = vand.u32 %v282, 4294901760
      %v859 = vsub.f32 %v282, %v858
      %v860 = vand.u32 %v859, 4294901760
      %861 = vmatpush.msra.mxu0 %v860
      %v862 = vand.u32 %v281, 4294901760
      %v863 = vsub.f32 %v281, %v862
      %v864 = vand.u32 %v863, 4294901760
      %865 = vmatpush.msra.mxu0 %v864
      %v866 = vand.u32 %v280, 4294901760
      %v867 = vsub.f32 %v280, %v866
      %v868 = vand.u32 %v867, 4294901760
      %869 = vmatpush.msra.mxu0 %v868
      %v870 = vand.u32 %v279, 4294901760
      %v871 = vsub.f32 %v279, %v870
      %v872 = vand.u32 %v871, 4294901760
      %873 = vmatpush.msra.mxu0 %v872
      %v874 = vand.u32 %v639, 4294901760
      %875 = vmatmul.f32.gmra.mxu0 %v874
      %v876 = vpop.f32.mrf.mxu0
      %v877 = vadd.f32 %v826, %v876
      %v878 = vand.u32 %v642, 4294901760
      %879 = vmatmul.f32.gmra.mxu0 %v878
      %v880 = vpop.f32.mrf.mxu0
      %v881 = vadd.f32 %v832, %v880
      %v882 = vand.u32 %v645, 4294901760
      %883 = vmatmul.f32.gmra.mxu0 %v882
      %v884 = vpop.f32.mrf.mxu0
      %v885 = vadd.f32 %v838, %v884
      %v886 = vand.u32 %v648, 4294901760
      %887 = vmatmul.f32.gmra.mxu0 %v886
      %v888 = vpop.f32.mrf.mxu0
      %v889 = vadd.f32 %v844, %v888
      %890 = vdwg.mxu0
      %891 = vmatpush.msra.mxu0 0.0
      %892 = vmatpush.msra.mxu0 0.0
      %893 = vmatpush.msra.mxu0 0.0
      %894 = vmatpush.msra.mxu0 0.0
      %895 = vmatpush.msra.mxu0 0.0
      %896 = vmatpush.msra.mxu0 0.0
      %897 = vmatpush.msra.mxu0 0.0
      %898 = vmatpush.msra.mxu0 0.0
      %899 = vmatpush.msra.mxu0 0.0
      %900 = vmatpush.msra.mxu0 0.0
      %901 = vmatpush.msra.mxu0 0.0
      %902 = vmatpush.msra.mxu0 0.0
      %v903 = vand.u32 %v282, 4294901760
      %904 = vmatpush.msra.mxu0 %v903
      %v905 = vand.u32 %v281, 4294901760
      %906 = vmatpush.msra.mxu0 %v905
      %v907 = vand.u32 %v280, 4294901760
      %908 = vmatpush.msra.mxu0 %v907
      %v909 = vand.u32 %v279, 4294901760
      %910 = vmatpush.msra.mxu0 %v909
      %v911 = vand.u32 %v639, 4294901760
      %912 = vmatmul.f32.gmra.mxu0 %v911
      %v913 = vpop.f32.mrf.mxu0
      %v914 = vadd.f32 %v877, %v913
      %v915 = vand.u32 %v642, 4294901760
      %916 = vmatmul.f32.gmra.mxu0 %v915
      %v917 = vpop.f32.mrf.mxu0
      %v918 = vadd.f32 %v881, %v917
      %v919 = vand.u32 %v645, 4294901760
      %920 = vmatmul.f32.gmra.mxu0 %v919
      %v921 = vpop.f32.mrf.mxu0
      %v922 = vadd.f32 %v885, %v921
      %v923 = vand.u32 %v648, 4294901760
      %924 = vmatmul.f32.gmra.mxu0 %v923
      %v925 = vpop.f32.mrf.mxu0
      %v926 = vadd.f32 %v889, %v925
      %927 = vdwg.mxu0
      %929 = vset.pattern.permute.xlu0 0
      %930 = vperm.xlu0 %929, %v303
      %v931 = vpop.permute.xlu0 %930
      %934 = vset.pattern.permute.xlu0 0
      %935 = vperm.xlu0 %934, %v304
      %v936 = vpop.permute.xlu0 %935
      %939 = vset.pattern.permute.xlu0 0
      %940 = vperm.xlu0 %939, %v305
      %v941 = vpop.permute.xlu0 %940
      %944 = vset.pattern.permute.xlu0 0
      %945 = vperm.xlu0 %944, %v306
      %v946 = vpop.permute.xlu0 %945
      %v949 = vsel %vm327, %v291, 0
      %v952 = vsel %vm327, %v292, 0
      %v955 = vsel %vm327, %v293, 0
      %v958 = vsel %vm327, %v294, 0
      %960 = vmatpush.msra.mxu0 0.0
      %961 = vmatpush.msra.mxu0 0.0
      %962 = vmatpush.msra.mxu0 0.0
      %963 = vmatpush.msra.mxu0 0.0
      %964 = vmatpush.msra.mxu0 0.0
      %965 = vmatpush.msra.mxu0 0.0
      %966 = vmatpush.msra.mxu0 0.0
      %967 = vmatpush.msra.mxu0 0.0
      %968 = vmatpush.msra.mxu0 0.0
      %969 = vmatpush.msra.mxu0 0.0
      %970 = vmatpush.msra.mxu0 0.0
      %971 = vmatpush.msra.mxu0 0.0
      %v972 = vand.u32 %v282, 4294901760
      %973 = vmatpush.msra.mxu0 %v972
      %v974 = vand.u32 %v281, 4294901760
      %975 = vmatpush.msra.mxu0 %v974
      %v976 = vand.u32 %v280, 4294901760
      %977 = vmatpush.msra.mxu0 %v976
      %v978 = vand.u32 %v279, 4294901760
      %979 = vmatpush.msra.mxu0 %v978
      %v980 = vand.u32 %v949, 4294901760
      %v981 = vsub.f32 %v949, %v980
      %v982 = vand.u32 %v981, 4294901760
      %v983 = vsub.f32 %v981, %v982
      %v984 = vand.u32 %v983, 4294901760
      %985 = vmatmul.f32.gmra.mxu0 %v984
      %v986 = vpop.f32.mrf.mxu0
      %v987 = vadd.f32 %v931, %v986
      %v988 = vand.u32 %v952, 4294901760
      %v989 = vsub.f32 %v952, %v988
      %v990 = vand.u32 %v989, 4294901760
      %v991 = vsub.f32 %v989, %v990
      %v992 = vand.u32 %v991, 4294901760
      %993 = vmatmul.f32.gmra.mxu0 %v992
      %v994 = vpop.f32.mrf.mxu0
      %v995 = vadd.f32 %v936, %v994
      %v996 = vand.u32 %v955, 4294901760
      %v997 = vsub.f32 %v955, %v996
      %v998 = vand.u32 %v997, 4294901760
      %v999 = vsub.f32 %v997, %v998
      %v1000 = vand.u32 %v999, 4294901760
      %1001 = vmatmul.f32.gmra.mxu0 %v1000
      %v1002 = vpop.f32.mrf.mxu0
      %v1003 = vadd.f32 %v941, %v1002
      %v1004 = vand.u32 %v958, 4294901760
      %v1005 = vsub.f32 %v958, %v1004
      %v1006 = vand.u32 %v1005, 4294901760
      %v1007 = vsub.f32 %v1005, %v1006
      %v1008 = vand.u32 %v1007, 4294901760
      %1009 = vmatmul.f32.gmra.mxu0 %v1008
      %v1010 = vpop.f32.mrf.mxu0
      %v1011 = vadd.f32 %v946, %v1010
      %1012 = vdwg.mxu0
      %1013 = vmatpush.msra.mxu0 0.0
      %1014 = vmatpush.msra.mxu0 0.0
      %1015 = vmatpush.msra.mxu0 0.0
      %1016 = vmatpush.msra.mxu0 0.0
      %1017 = vmatpush.msra.mxu0 0.0
      %1018 = vmatpush.msra.mxu0 0.0
      %1019 = vmatpush.msra.mxu0 0.0
      %1020 = vmatpush.msra.mxu0 0.0
      %1021 = vmatpush.msra.mxu0 0.0
      %1022 = vmatpush.msra.mxu0 0.0
      %1023 = vmatpush.msra.mxu0 0.0
      %1024 = vmatpush.msra.mxu0 0.0
      %v1025 = vand.u32 %v282, 4294901760
      %v1026 = vsub.f32 %v282, %v1025
      %v1027 = vand.u32 %v1026, 4294901760
      %v1028 = vsub.f32 %v1026, %v1027
      %v1029 = vand.u32 %v1028, 4294901760
      %1030 = vmatpush.msra.mxu0 %v1029
      %v1031 = vand.u32 %v281, 4294901760
      %v1032 = vsub.f32 %v281, %v1031
      %v1033 = vand.u32 %v1032, 4294901760
      %v1034 = vsub.f32 %v1032, %v1033
      %v1035 = vand.u32 %v1034, 4294901760
      %1036 = vmatpush.msra.mxu0 %v1035
      %v1037 = vand.u32 %v280, 4294901760
      %v1038 = vsub.f32 %v280, %v1037
      %v1039 = vand.u32 %v1038, 4294901760
      %v1040 = vsub.f32 %v1038, %v1039
      %v1041 = vand.u32 %v1040, 4294901760
      %1042 = vmatpush.msra.mxu0 %v1041
      %v1043 = vand.u32 %v279, 4294901760
      %v1044 = vsub.f32 %v279, %v1043
      %v1045 = vand.u32 %v1044, 4294901760
      %v1046 = vsub.f32 %v1044, %v1045
      %v1047 = vand.u32 %v1046, 4294901760
      %1048 = vmatpush.msra.mxu0 %v1047
      %v1049 = vand.u32 %v949, 4294901760
      %1050 = vmatmul.f32.gmra.mxu0 %v1049
      %v1051 = vpop.f32.mrf.mxu0
      %v1052 = vadd.f32 %v987, %v1051
      %v1053 = vand.u32 %v952, 4294901760
      %1054 = vmatmul.f32.gmra.mxu0 %v1053
      %v1055 = vpop.f32.mrf.mxu0
      %v1056 = vadd.f32 %v995, %v1055
      %v1057 = vand.u32 %v955, 4294901760
      %1058 = vmatmul.f32.gmra.mxu0 %v1057
      %v1059 = vpop.f32.mrf.mxu0
      %v1060 = vadd.f32 %v1003, %v1059
      %v1061 = vand.u32 %v958, 4294901760
      %1062 = vmatmul.f32.gmra.mxu0 %v1061
      %v1063 = vpop.f32.mrf.mxu0
      %v1064 = vadd.f32 %v1011, %v1063
      %1065 = vdwg.mxu0
      %1066 = vmatpush.msra.mxu0 0.0
      %1067 = vmatpush.msra.mxu0 0.0
      %1068 = vmatpush.msra.mxu0 0.0
      %1069 = vmatpush.msra.mxu0 0.0
      %1070 = vmatpush.msra.mxu0 0.0
      %1071 = vmatpush.msra.mxu0 0.0
      %1072 = vmatpush.msra.mxu0 0.0
      %1073 = vmatpush.msra.mxu0 0.0
      %1074 = vmatpush.msra.mxu0 0.0
      %1075 = vmatpush.msra.mxu0 0.0
      %1076 = vmatpush.msra.mxu0 0.0
      %1077 = vmatpush.msra.mxu0 0.0
      %v1078 = vand.u32 %v282, 4294901760
      %v1079 = vsub.f32 %v282, %v1078
      %1080 = vmatpush.msra.mxu0 %v1079
      %v1081 = vand.u32 %v281, 4294901760
      %v1082 = vsub.f32 %v281, %v1081
      %1083 = vmatpush.msra.mxu0 %v1082
      %v1084 = vand.u32 %v280, 4294901760
      %v1085 = vsub.f32 %v280, %v1084
      %1086 = vmatpush.msra.mxu0 %v1085
      %v1087 = vand.u32 %v279, 4294901760
      %v1088 = vsub.f32 %v279, %v1087
      %1089 = vmatpush.msra.mxu0 %v1088
      %v1090 = vand.u32 %v949, 4294901760
      %v1091 = vsub.f32 %v949, %v1090
      %1092 = vmatmul.f32.gmra.mxu0 %v1091
      %v1093 = vpop.f32.mrf.mxu0
      %v1094 = vadd.f32 %v1052, %v1093
      %v1095 = vand.u32 %v952, 4294901760
      %v1096 = vsub.f32 %v952, %v1095
      %1097 = vmatmul.f32.gmra.mxu0 %v1096
      %v1098 = vpop.f32.mrf.mxu0
      %v1099 = vadd.f32 %v1056, %v1098
      %v1100 = vand.u32 %v955, 4294901760
      %v1101 = vsub.f32 %v955, %v1100
      %1102 = vmatmul.f32.gmra.mxu0 %v1101
      %v1103 = vpop.f32.mrf.mxu0
      %v1104 = vadd.f32 %v1060, %v1103
      %v1105 = vand.u32 %v958, 4294901760
      %v1106 = vsub.f32 %v958, %v1105
      %1107 = vmatmul.f32.gmra.mxu0 %v1106
      %v1108 = vpop.f32.mrf.mxu0
      %v1109 = vadd.f32 %v1064, %v1108
      %1110 = vdwg.mxu0
      %1111 = vmatpush.msra.mxu0 0.0
      %1112 = vmatpush.msra.mxu0 0.0
      %1113 = vmatpush.msra.mxu0 0.0
      %1114 = vmatpush.msra.mxu0 0.0
      %1115 = vmatpush.msra.mxu0 0.0
      %1116 = vmatpush.msra.mxu0 0.0
      %1117 = vmatpush.msra.mxu0 0.0
      %1118 = vmatpush.msra.mxu0 0.0
      %1119 = vmatpush.msra.mxu0 0.0
      %1120 = vmatpush.msra.mxu0 0.0
      %1121 = vmatpush.msra.mxu0 0.0
      %1122 = vmatpush.msra.mxu0 0.0
      %v1123 = vand.u32 %v282, 4294901760
      %1124 = vmatpush.msra.mxu0 %v1123
      %v1125 = vand.u32 %v281, 4294901760
      %1126 = vmatpush.msra.mxu0 %v1125
      %v1127 = vand.u32 %v280, 4294901760
      %1128 = vmatpush.msra.mxu0 %v1127
      %v1129 = vand.u32 %v279, 4294901760
      %1130 = vmatpush.msra.mxu0 %v1129
      %v1131 = vand.u32 %v949, 4294901760
      %v1132 = vsub.f32 %v949, %v1131
      %v1133 = vand.u32 %v1132, 4294901760
      %1134 = vmatmul.f32.gmra.mxu0 %v1133
      %v1135 = vpop.f32.mrf.mxu0
      %v1136 = vadd.f32 %v1094, %v1135
      %v1137 = vand.u32 %v952, 4294901760
      %v1138 = vsub.f32 %v952, %v1137
      %v1139 = vand.u32 %v1138, 4294901760
      %1140 = vmatmul.f32.gmra.mxu0 %v1139
      %v1141 = vpop.f32.mrf.mxu0
      %v1142 = vadd.f32 %v1099, %v1141
      %v1143 = vand.u32 %v955, 4294901760
      %v1144 = vsub.f32 %v955, %v1143
      %v1145 = vand.u32 %v1144, 4294901760
      %1146 = vmatmul.f32.gmra.mxu0 %v1145
      %v1147 = vpop.f32.mrf.mxu0
      %v1148 = vadd.f32 %v1104, %v1147
      %v1149 = vand.u32 %v958, 4294901760
      %v1150 = vsub.f32 %v958, %v1149
      %v1151 = vand.u32 %v1150, 4294901760
      %1152 = vmatmul.f32.gmra.mxu0 %v1151
      %v1153 = vpop.f32.mrf.mxu0
      %v1154 = vadd.f32 %v1109, %v1153
      %1155 = vdwg.mxu0
      %1156 = vmatpush.msra.mxu0 0.0
      %1157 = vmatpush.msra.mxu0 0.0
      %1158 = vmatpush.msra.mxu0 0.0
      %1159 = vmatpush.msra.mxu0 0.0
      %1160 = vmatpush.msra.mxu0 0.0
      %1161 = vmatpush.msra.mxu0 0.0
      %1162 = vmatpush.msra.mxu0 0.0
      %1163 = vmatpush.msra.mxu0 0.0
      %1164 = vmatpush.msra.mxu0 0.0
      %1165 = vmatpush.msra.mxu0 0.0
      %1166 = vmatpush.msra.mxu0 0.0
      %1167 = vmatpush.msra.mxu0 0.0
      %v1168 = vand.u32 %v282, 4294901760
      %v1169 = vsub.f32 %v282, %v1168
      %v1170 = vand.u32 %v1169, 4294901760
      %1171 = vmatpush.msra.mxu0 %v1170
      %v1172 = vand.u32 %v281, 4294901760
      %v1173 = vsub.f32 %v281, %v1172
      %v1174 = vand.u32 %v1173, 4294901760
      %1175 = vmatpush.msra.mxu0 %v1174
      %v1176 = vand.u32 %v280, 4294901760
      %v1177 = vsub.f32 %v280, %v1176
      %v1178 = vand.u32 %v1177, 4294901760
      %1179 = vmatpush.msra.mxu0 %v1178
      %v1180 = vand.u32 %v279, 4294901760
      %v1181 = vsub.f32 %v279, %v1180
      %v1182 = vand.u32 %v1181, 4294901760
      %1183 = vmatpush.msra.mxu0 %v1182
      %v1184 = vand.u32 %v949, 4294901760
      %1185 = vmatmul.f32.gmra.mxu0 %v1184
      %v1186 = vpop.f32.mrf.mxu0
      %v1187 = vadd.f32 %v1136, %v1186
      %v1188 = vand.u32 %v952, 4294901760
      %1189 = vmatmul.f32.gmra.mxu0 %v1188
      %v1190 = vpop.f32.mrf.mxu0
      %v1191 = vadd.f32 %v1142, %v1190
      %v1192 = vand.u32 %v955, 4294901760
      %1193 = vmatmul.f32.gmra.mxu0 %v1192
      %v1194 = vpop.f32.mrf.mxu0
      %v1195 = vadd.f32 %v1148, %v1194
      %v1196 = vand.u32 %v958, 4294901760
      %1197 = vmatmul.f32.gmra.mxu0 %v1196
      %v1198 = vpop.f32.mrf.mxu0
      %v1199 = vadd.f32 %v1154, %v1198
      %1200 = vdwg.mxu0
      %1201 = vmatpush.msra.mxu0 0.0
      %1202 = vmatpush.msra.mxu0 0.0
      %1203 = vmatpush.msra.mxu0 0.0
      %1204 = vmatpush.msra.mxu0 0.0
      %1205 = vmatpush.msra.mxu0 0.0
      %1206 = vmatpush.msra.mxu0 0.0
      %1207 = vmatpush.msra.mxu0 0.0
      %1208 = vmatpush.msra.mxu0 0.0
      %1209 = vmatpush.msra.mxu0 0.0
      %1210 = vmatpush.msra.mxu0 0.0
      %1211 = vmatpush.msra.mxu0 0.0
      %1212 = vmatpush.msra.mxu0 0.0
      %v1213 = vand.u32 %v282, 4294901760
      %1214 = vmatpush.msra.mxu0 %v1213
      %v1215 = vand.u32 %v281, 4294901760
      %1216 = vmatpush.msra.mxu0 %v1215
      %v1217 = vand.u32 %v280, 4294901760
      %1218 = vmatpush.msra.mxu0 %v1217
      %v1219 = vand.u32 %v279, 4294901760
      %1220 = vmatpush.msra.mxu0 %v1219
      %v1221 = vand.u32 %v949, 4294901760
      %1222 = vmatmul.f32.gmra.mxu0 %v1221
      %v1223 = vpop.f32.mrf.mxu0
      %v1224 = vadd.f32 %v1187, %v1223
      %v1225 = vand.u32 %v952, 4294901760
      %1226 = vmatmul.f32.gmra.mxu0 %v1225
      %v1227 = vpop.f32.mrf.mxu0
      %v1228 = vadd.f32 %v1191, %v1227
      %v1229 = vand.u32 %v955, 4294901760
      %1230 = vmatmul.f32.gmra.mxu0 %v1229
      %v1231 = vpop.f32.mrf.mxu0
      %v1232 = vadd.f32 %v1195, %v1231
      %v1233 = vand.u32 %v958, 4294901760
      %1234 = vmatmul.f32.gmra.mxu0 %v1233
      %v1235 = vpop.f32.mrf.mxu0
      %v1236 = vadd.f32 %v1199, %v1235
      %1237 = vdwg.mxu0
      %1238 = vxpose.xlu0.b32.start [1/16] %v604, 128
      %1239 = vxpose.xlu0.b32.cont [2/16] %v608, 128
      %1240 = vxpose.xlu0.b32.cont [3/16] %v612, 128
      %1241 = vxpose.xlu0.b32.cont [4/16] %v616, 128
      %1242 = vxpose.xlu0.b32.cont [5/16] 0.0, 128
      %1243 = vxpose.xlu0.b32.cont [6/16] 0.0, 128
      %1244 = vxpose.xlu0.b32.cont [7/16] 0.0, 128
      %1245 = vxpose.xlu0.b32.cont [8/16] 0.0, 128
      %1246 = vxpose.xlu0.b32.cont [9/16] 0.0, 128
      %1247 = vxpose.xlu0.b32.cont [10/16] 0.0, 128
      %1248 = vxpose.xlu0.b32.cont [11/16] 0.0, 128
      %1249 = vxpose.xlu0.b32.cont [12/16] 0.0, 128
      %1250 = vxpose.xlu0.b32.cont [13/16] 0.0, 128
      %1251 = vxpose.xlu0.b32.cont [14/16] 0.0, 128
      %1252 = vxpose.xlu0.b32.cont [15/16] 0.0, 128
      %1253 = vxpose.xlu0.b32.end [16/16] 0.0, 128
      %v1254 = vpop.trf.xlu0
      %v1255 = vpop.trf.xlu0
      %v1256 = vpop.trf.xlu0
      %v1257 = vpop.trf.xlu0
      %v1258 = vpop.trf.xlu0
      %v1259 = vpop.trf.xlu0
      %v1260 = vpop.trf.xlu0
      %v1261 = vpop.trf.xlu0
      %v1262 = vpop.trf.xlu0
      %v1263 = vpop.trf.xlu0
      %v1264 = vpop.trf.xlu0
      %v1265 = vpop.trf.xlu0
      %v1266 = vpop.trf.xlu0
      %v1267 = vpop.trf.xlu0
      %v1268 = vpop.trf.xlu0
      %v1269 = vpop.trf.xlu0
      %v1271 = vsel %vm327, %v1254, 0
      %v1274 = vsel %vm327, %v1255, 0
      %1276 = vmatpush.msra.mxu0 0.0
      %1277 = vmatpush.msra.mxu0 0.0
      %1278 = vmatpush.msra.mxu0 0.0
      %1279 = vmatpush.msra.mxu0 0.0
      %1280 = vmatpush.msra.mxu0 0.0
      %1281 = vmatpush.msra.mxu0 0.0
      %1282 = vmatpush.msra.mxu0 0.0
      %1283 = vmatpush.msra.mxu0 0.0
      %1284 = vmatpush.msra.mxu0 0.0
      %1285 = vmatpush.msra.mxu0 0.0
      %1286 = vmatpush.msra.mxu0 0.0
      %1287 = vmatpush.msra.mxu0 0.0
      %v1288 = vand.u32 %v926, 4294901760
      %1289 = vmatpush.msra.mxu0 %v1288
      %v1290 = vand.u32 %v922, 4294901760
      %1291 = vmatpush.msra.mxu0 %v1290
      %v1292 = vand.u32 %v918, 4294901760
      %1293 = vmatpush.msra.mxu0 %v1292
      %v1294 = vand.u32 %v914, 4294901760
      %1295 = vmatpush.msra.mxu0 %v1294
      %v1296 = vand.u32 %v1271, 4294901760
      %v1297 = vsub.f32 %v1271, %v1296
      %v1298 = vand.u32 %v1297, 4294901760
      %v1299 = vsub.f32 %v1297, %v1298
      %v1300 = vand.u32 %v1299, 4294901760
      %1301 = vmatmul.f32.gmra.mxu0 %v1300
      %v1302 = vpop.f32.mrf.mxu0
      %v1303 = vadd.f32 0.0, %v1302
      %v1304 = vand.u32 %v1274, 4294901760
      %v1305 = vsub.f32 %v1274, %v1304
      %v1306 = vand.u32 %v1305, 4294901760
      %v1307 = vsub.f32 %v1305, %v1306
      %v1308 = vand.u32 %v1307, 4294901760
      %1309 = vmatmul.f32.gmra.mxu0 %v1308
      %v1310 = vpop.f32.mrf.mxu0
      %v1311 = vadd.f32 0.0, %v1310
      %1312 = vdwg.mxu0
      %1313 = vmatpush.msra.mxu0 0.0
      %1314 = vmatpush.msra.mxu0 0.0
      %1315 = vmatpush.msra.mxu0 0.0
      %1316 = vmatpush.msra.mxu0 0.0
      %1317 = vmatpush.msra.mxu0 0.0
      %1318 = vmatpush.msra.mxu0 0.0
      %1319 = vmatpush.msra.mxu0 0.0
      %1320 = vmatpush.msra.mxu0 0.0
      %1321 = vmatpush.msra.mxu0 0.0
      %1322 = vmatpush.msra.mxu0 0.0
      %1323 = vmatpush.msra.mxu0 0.0
      %1324 = vmatpush.msra.mxu0 0.0
      %v1325 = vand.u32 %v926, 4294901760
      %v1326 = vsub.f32 %v926, %v1325
      %v1327 = vand.u32 %v1326, 4294901760
      %v1328 = vsub.f32 %v1326, %v1327
      %v1329 = vand.u32 %v1328, 4294901760
      %1330 = vmatpush.msra.mxu0 %v1329
      %v1331 = vand.u32 %v922, 4294901760
      %v1332 = vsub.f32 %v922, %v1331
      %v1333 = vand.u32 %v1332, 4294901760
      %v1334 = vsub.f32 %v1332, %v1333
      %v1335 = vand.u32 %v1334, 4294901760
      %1336 = vmatpush.msra.mxu0 %v1335
      %v1337 = vand.u32 %v918, 4294901760
      %v1338 = vsub.f32 %v918, %v1337
      %v1339 = vand.u32 %v1338, 4294901760
      %v1340 = vsub.f32 %v1338, %v1339
      %v1341 = vand.u32 %v1340, 4294901760
      %1342 = vmatpush.msra.mxu0 %v1341
      %v1343 = vand.u32 %v914, 4294901760
      %v1344 = vsub.f32 %v914, %v1343
      %v1345 = vand.u32 %v1344, 4294901760
      %v1346 = vsub.f32 %v1344, %v1345
      %v1347 = vand.u32 %v1346, 4294901760
      %1348 = vmatpush.msra.mxu0 %v1347
      %v1349 = vand.u32 %v1271, 4294901760
      %1350 = vmatmul.f32.gmra.mxu0 %v1349
      %v1351 = vpop.f32.mrf.mxu0
      %v1352 = vadd.f32 %v1303, %v1351
      %v1353 = vand.u32 %v1274, 4294901760
      %1354 = vmatmul.f32.gmra.mxu0 %v1353
      %v1355 = vpop.f32.mrf.mxu0
      %v1356 = vadd.f32 %v1311, %v1355
      %1357 = vdwg.mxu0
      %1358 = vmatpush.msra.mxu0 0.0
      %1359 = vmatpush.msra.mxu0 0.0
      %1360 = vmatpush.msra.mxu0 0.0
      %1361 = vmatpush.msra.mxu0 0.0
      %1362 = vmatpush.msra.mxu0 0.0
      %1363 = vmatpush.msra.mxu0 0.0
      %1364 = vmatpush.msra.mxu0 0.0
      %1365 = vmatpush.msra.mxu0 0.0
      %1366 = vmatpush.msra.mxu0 0.0
      %1367 = vmatpush.msra.mxu0 0.0
      %1368 = vmatpush.msra.mxu0 0.0
      %1369 = vmatpush.msra.mxu0 0.0
      %v1370 = vand.u32 %v926, 4294901760
      %v1371 = vsub.f32 %v926, %v1370
      %1372 = vmatpush.msra.mxu0 %v1371
      %v1373 = vand.u32 %v922, 4294901760
      %v1374 = vsub.f32 %v922, %v1373
      %1375 = vmatpush.msra.mxu0 %v1374
      %v1376 = vand.u32 %v918, 4294901760
      %v1377 = vsub.f32 %v918, %v1376
      %1378 = vmatpush.msra.mxu0 %v1377
      %v1379 = vand.u32 %v914, 4294901760
      %v1380 = vsub.f32 %v914, %v1379
      %1381 = vmatpush.msra.mxu0 %v1380
      %v1382 = vand.u32 %v1271, 4294901760
      %v1383 = vsub.f32 %v1271, %v1382
      %1384 = vmatmul.f32.gmra.mxu0 %v1383
      %v1385 = vpop.f32.mrf.mxu0
      %v1386 = vadd.f32 %v1352, %v1385
      %v1387 = vand.u32 %v1274, 4294901760
      %v1388 = vsub.f32 %v1274, %v1387
      %1389 = vmatmul.f32.gmra.mxu0 %v1388
      %v1390 = vpop.f32.mrf.mxu0
      %v1391 = vadd.f32 %v1356, %v1390
      %1392 = vdwg.mxu0
      %1393 = vmatpush.msra.mxu0 0.0
      %1394 = vmatpush.msra.mxu0 0.0
      %1395 = vmatpush.msra.mxu0 0.0
      %1396 = vmatpush.msra.mxu0 0.0
      %1397 = vmatpush.msra.mxu0 0.0
      %1398 = vmatpush.msra.mxu0 0.0
      %1399 = vmatpush.msra.mxu0 0.0
      %1400 = vmatpush.msra.mxu0 0.0
      %1401 = vmatpush.msra.mxu0 0.0
      %1402 = vmatpush.msra.mxu0 0.0
      %1403 = vmatpush.msra.mxu0 0.0
      %1404 = vmatpush.msra.mxu0 0.0
      %v1405 = vand.u32 %v926, 4294901760
      %1406 = vmatpush.msra.mxu0 %v1405
      %v1407 = vand.u32 %v922, 4294901760
      %1408 = vmatpush.msra.mxu0 %v1407
      %v1409 = vand.u32 %v918, 4294901760
      %1410 = vmatpush.msra.mxu0 %v1409
      %v1411 = vand.u32 %v914, 4294901760
      %1412 = vmatpush.msra.mxu0 %v1411
      %v1413 = vand.u32 %v1271, 4294901760
      %v1414 = vsub.f32 %v1271, %v1413
      %v1415 = vand.u32 %v1414, 4294901760
      %1416 = vmatmul.f32.gmra.mxu0 %v1415
      %v1417 = vpop.f32.mrf.mxu0
      %v1418 = vadd.f32 %v1386, %v1417
      %v1419 = vand.u32 %v1274, 4294901760
      %v1420 = vsub.f32 %v1274, %v1419
      %v1421 = vand.u32 %v1420, 4294901760
      %1422 = vmatmul.f32.gmra.mxu0 %v1421
      %v1423 = vpop.f32.mrf.mxu0
      %v1424 = vadd.f32 %v1391, %v1423
      %1425 = vdwg.mxu0
      %1426 = vmatpush.msra.mxu0 0.0
      %1427 = vmatpush.msra.mxu0 0.0
      %1428 = vmatpush.msra.mxu0 0.0
      %1429 = vmatpush.msra.mxu0 0.0
      %1430 = vmatpush.msra.mxu0 0.0
      %1431 = vmatpush.msra.mxu0 0.0
      %1432 = vmatpush.msra.mxu0 0.0
      %1433 = vmatpush.msra.mxu0 0.0
      %1434 = vmatpush.msra.mxu0 0.0
      %1435 = vmatpush.msra.mxu0 0.0
      %1436 = vmatpush.msra.mxu0 0.0
      %1437 = vmatpush.msra.mxu0 0.0
      %v1438 = vand.u32 %v926, 4294901760
      %v1439 = vsub.f32 %v926, %v1438
      %v1440 = vand.u32 %v1439, 4294901760
      %1441 = vmatpush.msra.mxu0 %v1440
      %v1442 = vand.u32 %v922, 4294901760
      %v1443 = vsub.f32 %v922, %v1442
      %v1444 = vand.u32 %v1443, 4294901760
      %1445 = vmatpush.msra.mxu0 %v1444
      %v1446 = vand.u32 %v918, 4294901760
      %v1447 = vsub.f32 %v918, %v1446
      %v1448 = vand.u32 %v1447, 4294901760
      %1449 = vmatpush.msra.mxu0 %v1448
      %v1450 = vand.u32 %v914, 4294901760
      %v1451 = vsub.f32 %v914, %v1450
      %v1452 = vand.u32 %v1451, 4294901760
      %1453 = vmatpush.msra.mxu0 %v1452
      %v1454 = vand.u32 %v1271, 4294901760
      %1455 = vmatmul.f32.gmra.mxu0 %v1454
      %v1456 = vpop.f32.mrf.mxu0
      %v1457 = vadd.f32 %v1418, %v1456
      %v1458 = vand.u32 %v1274, 4294901760
      %1459 = vmatmul.f32.gmra.mxu0 %v1458
      %v1460 = vpop.f32.mrf.mxu0
      %v1461 = vadd.f32 %v1424, %v1460
      %1462 = vdwg.mxu0
      %1463 = vmatpush.msra.mxu0 0.0
      %1464 = vmatpush.msra.mxu0 0.0
      %1465 = vmatpush.msra.mxu0 0.0
      %1466 = vmatpush.msra.mxu0 0.0
      %1467 = vmatpush.msra.mxu0 0.0
      %1468 = vmatpush.msra.mxu0 0.0
      %1469 = vmatpush.msra.mxu0 0.0
      %1470 = vmatpush.msra.mxu0 0.0
      %1471 = vmatpush.msra.mxu0 0.0
      %1472 = vmatpush.msra.mxu0 0.0
      %1473 = vmatpush.msra.mxu0 0.0
      %1474 = vmatpush.msra.mxu0 0.0
      %v1475 = vand.u32 %v926, 4294901760
      %1476 = vmatpush.msra.mxu0 %v1475
      %v1477 = vand.u32 %v922, 4294901760
      %1478 = vmatpush.msra.mxu0 %v1477
      %v1479 = vand.u32 %v918, 4294901760
      %1480 = vmatpush.msra.mxu0 %v1479
      %v1481 = vand.u32 %v914, 4294901760
      %1482 = vmatpush.msra.mxu0 %v1481
      %v1483 = vand.u32 %v1271, 4294901760
      %1484 = vmatmul.f32.gmra.mxu0 %v1483
      %v1485 = vpop.f32.mrf.mxu0
      %v1486 = vadd.f32 %v1457, %v1485
      %v1487 = vand.u32 %v1274, 4294901760
      %1488 = vmatmul.f32.gmra.mxu0 %v1487
      %v1489 = vpop.f32.mrf.mxu0
      %v1490 = vadd.f32 %v1461, %v1489
      %1491 = vdwg.mxu0
      %v1492 = vmul.f32 %v1486, 0.17677669
      %v1493 = vmul.f32 %v1490, 0.17677669
      %vm1494 = vcmask 130048
      %v1495 = vsel %vm1494, %v1492, -inf
      %1496 = vmax.xlane.f32.xlu0 %v1495
      %v1497 = vpop.xlane.xlu0 %1496
      %v1498 = vsel %vm1494, %v1493, -inf
      %1499 = vmax.xlane.f32.xlu0 %v1498
      %v1500 = vpop.xlane.xlu0 %1499
      %v1501 = vsub.f32 %v1492, %v1497
      %v1502 = vsub.f32 %v1493, %v1500
      %v1503 = vmul.f32 %v1501, 1.442695
      %v1504 = vpow.pop %v1503
      %v1505 = vmul.f32 %v1502, 1.442695
      %v1506 = vpow.pop %v1505
      %v1507 = vsel %vm1494, %v1504, 0.0
      %1508 = vadd.xlane.f32.xlu0 %v1507
      %v1509 = vpop.xlane.xlu0 %1508
      %v1510 = vsel %vm1494, %v1506, 0.0
      %1511 = vadd.xlane.f32.xlu0 %v1510
      %v1512 = vpop.xlane.xlu0 %1511
      %v1513 = vrcp.pop %v1509
      %v1514 = vmul.f32 %v1509, %v1513
      %v1515 = vsub.f32 1.0, %v1514
      %v1516 = vmul.f32 %v1513, %v1515
      %v1517 = vadd.f32 %v1513, %v1516
      %vm1518 = vweird.f32 %v1509
      %vm1519 = vweird.f32 %v1513
      %vm1520 = vmor %vm1518, %vm1519
      %v1521 = vsel %vm1520, %v1513, %v1517
      %v1522 = vand.u32 2147483647, %v1509
      %vm1523 = vcmp.eq.f32.partialorder %v1522, 8.507059e+37
      %v1524 = vand.u32 %v1509, 2147483648
      %v1525 = vor.u32 1.1754944e-38, %v1524
      %v1526 = vsel %vm1523, %v1525, %v1521
      %v1527 = vmul.f32 %v1504, %v1526
      %v1528 = vrcp.pop %v1512
      %v1529 = vmul.f32 %v1512, %v1528
      %v1530 = vsub.f32 1.0, %v1529
      %v1531 = vmul.f32 %v1528, %v1530
      %v1532 = vadd.f32 %v1528, %v1531
      %vm1533 = vweird.f32 %v1512
      %vm1534 = vweird.f32 %v1528
      %vm1535 = vmor %vm1533, %vm1534
      %v1536 = vsel %vm1535, %v1528, %v1532
      %v1537 = vand.u32 2147483647, %v1512
      %vm1538 = vcmp.eq.f32.partialorder %v1537, 8.507059e+37
      %v1539 = vand.u32 %v1512, 2147483648
      %v1540 = vor.u32 1.1754944e-38, %v1539
      %v1541 = vsel %vm1538, %v1540, %v1536
      %v1542 = vmul.f32 %v1506, %v1541
      %v1544 = vsel %vm1494, %v1224, 0
      %v1547 = vsel %vm1494, %v1228, 0
      %v1550 = vsel %vm1494, %v1232, 0
      %v1553 = vsel %vm1494, %v1236, 0
      %v1556 = vsel %vm1494, %v1527, 0
      %v1559 = vsel %vm1494, %v1542, 0
      %1561 = vmatpush.xpose.msra.mxu0 0.0
      %1562 = vmatpush.xpose.msra.mxu0 0.0
      %1563 = vmatpush.xpose.msra.mxu0 0.0
      %1564 = vmatpush.xpose.msra.mxu0 0.0
      %1565 = vmatpush.xpose.msra.mxu0 0.0
      %1566 = vmatpush.xpose.msra.mxu0 0.0
      %1567 = vmatpush.xpose.msra.mxu0 0.0
      %1568 = vmatpush.xpose.msra.mxu0 0.0
      %1569 = vmatpush.xpose.msra.mxu0 0.0
      %1570 = vmatpush.xpose.msra.mxu0 0.0
      %1571 = vmatpush.xpose.msra.mxu0 0.0
      %1572 = vmatpush.xpose.msra.mxu0 0.0
      %1573 = vmatpush.xpose.msra.mxu0 0.0
      %1574 = vmatpush.xpose.msra.mxu0 0.0
      %v1575 = vand.u32 %v1559, 4294901760
      %1576 = vmatpush.xpose.msra.mxu0 %v1575
      %v1577 = vand.u32 %v1556, 4294901760
      %1578 = vmatpush.xpose.msra.mxu0 %v1577
      %v1579 = vand.u32 %v1544, 4294901760
      %v1580 = vsub.f32 %v1544, %v1579
      %v1581 = vand.u32 %v1580, 4294901760
      %v1582 = vsub.f32 %v1580, %v1581
      %v1583 = vand.u32 %v1582, 4294901760
      %1584 = vmatmul.f32.gmra.mxu0 %v1583
      %v1585 = vpop.f32.mrf.mxu0
      %v1586 = vadd.f32 %v279, %v1585
      %v1587 = vand.u32 %v1547, 4294901760
      %v1588 = vsub.f32 %v1547, %v1587
      %v1589 = vand.u32 %v1588, 4294901760
      %v1590 = vsub.f32 %v1588, %v1589
      %v1591 = vand.u32 %v1590, 4294901760
      %1592 = vmatmul.f32.gmra.mxu0 %v1591
      %v1593 = vpop.f32.mrf.mxu0
      %v1594 = vadd.f32 %v280, %v1593
      %v1595 = vand.u32 %v1550, 4294901760
      %v1596 = vsub.f32 %v1550, %v1595
      %v1597 = vand.u32 %v1596, 4294901760
      %v1598 = vsub.f32 %v1596, %v1597
      %v1599 = vand.u32 %v1598, 4294901760
      %1600 = vmatmul.f32.gmra.mxu0 %v1599
      %v1601 = vpop.f32.mrf.mxu0
      %v1602 = vadd.f32 %v281, %v1601
      %v1603 = vand.u32 %v1553, 4294901760
      %v1604 = vsub.f32 %v1553, %v1603
      %v1605 = vand.u32 %v1604, 4294901760
      %v1606 = vsub.f32 %v1604, %v1605
      %v1607 = vand.u32 %v1606, 4294901760
      %1608 = vmatmul.f32.gmra.mxu0 %v1607
      %v1609 = vpop.f32.mrf.mxu0
      %v1610 = vadd.f32 %v282, %v1609
      %1611 = vdwg.mxu0
      %1612 = vmatpush.xpose.msra.mxu0 0.0
      %1613 = vmatpush.xpose.msra.mxu0 0.0
      %1614 = vmatpush.xpose.msra.mxu0 0.0
      %1615 = vmatpush.xpose.msra.mxu0 0.0
      %1616 = vmatpush.xpose.msra.mxu0 0.0
      %1617 = vmatpush.xpose.msra.mxu0 0.0
      %1618 = vmatpush.xpose.msra.mxu0 0.0
      %1619 = vmatpush.xpose.msra.mxu0 0.0
      %1620 = vmatpush.xpose.msra.mxu0 0.0
      %1621 = vmatpush.xpose.msra.mxu0 0.0
      %1622 = vmatpush.xpose.msra.mxu0 0.0
      %1623 = vmatpush.xpose.msra.mxu0 0.0
      %1624 = vmatpush.xpose.msra.mxu0 0.0
      %1625 = vmatpush.xpose.msra.mxu0 0.0
      %v1626 = vand.u32 %v1559, 4294901760
      %v1627 = vsub.f32 %v1559, %v1626
      %v1628 = vand.u32 %v1627, 4294901760
      %v1629 = vsub.f32 %v1627, %v1628
      %v1630 = vand.u32 %v1629, 4294901760
      %1631 = vmatpush.xpose.msra.mxu0 %v1630
      %v1632 = vand.u32 %v1556, 4294901760
      %v1633 = vsub.f32 %v1556, %v1632
      %v1634 = vand.u32 %v1633, 4294901760
      %v1635 = vsub.f32 %v1633, %v1634
      %v1636 = vand.u32 %v1635, 4294901760
      %1637 = vmatpush.xpose.msra.mxu0 %v1636
      %v1638 = vand.u32 %v1544, 4294901760
      %1639 = vmatmul.f32.gmra.mxu0 %v1638
      %v1640 = vpop.f32.mrf.mxu0
      %v1641 = vadd.f32 %v1586, %v1640
      %v1642 = vand.u32 %v1547, 4294901760
      %1643 = vmatmul.f32.gmra.mxu0 %v1642
      %v1644 = vpop.f32.mrf.mxu0
      %v1645 = vadd.f32 %v1594, %v1644
      %v1646 = vand.u32 %v1550, 4294901760
      %1647 = vmatmul.f32.gmra.mxu0 %v1646
      %v1648 = vpop.f32.mrf.mxu0
      %v1649 = vadd.f32 %v1602, %v1648
      %v1650 = vand.u32 %v1553, 4294901760
      %1651 = vmatmul.f32.gmra.mxu0 %v1650
      %v1652 = vpop.f32.mrf.mxu0
      %v1653 = vadd.f32 %v1610, %v1652
      %1654 = vdwg.mxu0
      %1655 = vmatpush.xpose.msra.mxu0 0.0
      %1656 = vmatpush.xpose.msra.mxu0 0.0
      %1657 = vmatpush.xpose.msra.mxu0 0.0
      %1658 = vmatpush.xpose.msra.mxu0 0.0
      %1659 = vmatpush.xpose.msra.mxu0 0.0
      %1660 = vmatpush.xpose.msra.mxu0 0.0
      %1661 = vmatpush.xpose.msra.mxu0 0.0
      %1662 = vmatpush.xpose.msra.mxu0 0.0
      %1663 = vmatpush.xpose.msra.mxu0 0.0
      %1664 = vmatpush.xpose.msra.mxu0 0.0
      %1665 = vmatpush.xpose.msra.mxu0 0.0
      %1666 = vmatpush.xpose.msra.mxu0 0.0
      %1667 = vmatpush.xpose.msra.mxu0 0.0
      %1668 = vmatpush.xpose.msra.mxu0 0.0
      %v1669 = vand.u32 %v1559, 4294901760
      %v1670 = vsub.f32 %v1559, %v1669
      %1671 = vmatpush.xpose.msra.mxu0 %v1670
      %v1672 = vand.u32 %v1556, 4294901760
      %v1673 = vsub.f32 %v1556, %v1672
      %1674 = vmatpush.xpose.msra.mxu0 %v1673
      %v1675 = vand.u32 %v1544, 4294901760
      %v1676 = vsub.f32 %v1544, %v1675
      %1677 = vmatmul.f32.gmra.mxu0 %v1676
      %v1678 = vpop.f32.mrf.mxu0
      %v1679 = vadd.f32 %v1641, %v1678
      %v1680 = vand.u32 %v1547, 4294901760
      %v1681 = vsub.f32 %v1547, %v1680
      %1682 = vmatmul.f32.gmra.mxu0 %v1681
      %v1683 = vpop.f32.mrf.mxu0
      %v1684 = vadd.f32 %v1645, %v1683
      %v1685 = vand.u32 %v1550, 4294901760
      %v1686 = vsub.f32 %v1550, %v1685
      %1687 = vmatmul.f32.gmra.mxu0 %v1686
      %v1688 = vpop.f32.mrf.mxu0
      %v1689 = vadd.f32 %v1649, %v1688
      %v1690 = vand.u32 %v1553, 4294901760
      %v1691 = vsub.f32 %v1553, %v1690
      %1692 = vmatmul.f32.gmra.mxu0 %v1691
      %v1693 = vpop.f32.mrf.mxu0
      %v1694 = vadd.f32 %v1653, %v1693
      %1695 = vdwg.mxu0
      %1696 = vmatpush.xpose.msra.mxu0 0.0
      %1697 = vmatpush.xpose.msra.mxu0 0.0
      %1698 = vmatpush.xpose.msra.mxu0 0.0
      %1699 = vmatpush.xpose.msra.mxu0 0.0
      %1700 = vmatpush.xpose.msra.mxu0 0.0
      %1701 = vmatpush.xpose.msra.mxu0 0.0
      %1702 = vmatpush.xpose.msra.mxu0 0.0
      %1703 = vmatpush.xpose.msra.mxu0 0.0
      %1704 = vmatpush.xpose.msra.mxu0 0.0
      %1705 = vmatpush.xpose.msra.mxu0 0.0
      %1706 = vmatpush.xpose.msra.mxu0 0.0
      %1707 = vmatpush.xpose.msra.mxu0 0.0
      %1708 = vmatpush.xpose.msra.mxu0 0.0
      %1709 = vmatpush.xpose.msra.mxu0 0.0
      %v1710 = vand.u32 %v1559, 4294901760
      %1711 = vmatpush.xpose.msra.mxu0 %v1710
      %v1712 = vand.u32 %v1556, 4294901760
      %1713 = vmatpush.xpose.msra.mxu0 %v1712
      %v1714 = vand.u32 %v1544, 4294901760
      %v1715 = vsub.f32 %v1544, %v1714
      %v1716 = vand.u32 %v1715, 4294901760
      %1717 = vmatmul.f32.gmra.mxu0 %v1716
      %v1718 = vpop.f32.mrf.mxu0
      %v1719 = vadd.f32 %v1679, %v1718
      %v1720 = vand.u32 %v1547, 4294901760
      %v1721 = vsub.f32 %v1547, %v1720
      %v1722 = vand.u32 %v1721, 4294901760
      %1723 = vmatmul.f32.gmra.mxu0 %v1722
      %v1724 = vpop.f32.mrf.mxu0
      %v1725 = vadd.f32 %v1684, %v1724
      %v1726 = vand.u32 %v1550, 4294901760
      %v1727 = vsub.f32 %v1550, %v1726
      %v1728 = vand.u32 %v1727, 4294901760
      %1729 = vmatmul.f32.gmra.mxu0 %v1728
      %v1730 = vpop.f32.mrf.mxu0
      %v1731 = vadd.f32 %v1689, %v1730
      %v1732 = vand.u32 %v1553, 4294901760
      %v1733 = vsub.f32 %v1553, %v1732
      %v1734 = vand.u32 %v1733, 4294901760
      %1735 = vmatmul.f32.gmra.mxu0 %v1734
      %v1736 = vpop.f32.mrf.mxu0
      %v1737 = vadd.f32 %v1694, %v1736
      %1738 = vdwg.mxu0
      %1739 = vmatpush.xpose.msra.mxu0 0.0
      %1740 = vmatpush.xpose.msra.mxu0 0.0
      %1741 = vmatpush.xpose.msra.mxu0 0.0
      %1742 = vmatpush.xpose.msra.mxu0 0.0
      %1743 = vmatpush.xpose.msra.mxu0 0.0
      %1744 = vmatpush.xpose.msra.mxu0 0.0
      %1745 = vmatpush.xpose.msra.mxu0 0.0
      %1746 = vmatpush.xpose.msra.mxu0 0.0
      %1747 = vmatpush.xpose.msra.mxu0 0.0
      %1748 = vmatpush.xpose.msra.mxu0 0.0
      %1749 = vmatpush.xpose.msra.mxu0 0.0
      %1750 = vmatpush.xpose.msra.mxu0 0.0
      %1751 = vmatpush.xpose.msra.mxu0 0.0
      %1752 = vmatpush.xpose.msra.mxu0 0.0
      %v1753 = vand.u32 %v1559, 4294901760
      %v1754 = vsub.f32 %v1559, %v1753
      %v1755 = vand.u32 %v1754, 4294901760
      %1756 = vmatpush.xpose.msra.mxu0 %v1755
      %v1757 = vand.u32 %v1556, 4294901760
      %v1758 = vsub.f32 %v1556, %v1757
      %v1759 = vand.u32 %v1758, 4294901760
      %1760 = vmatpush.xpose.msra.mxu0 %v1759
      %v1761 = vand.u32 %v1544, 4294901760
      %1762 = vmatmul.f32.gmra.mxu0 %v1761
      %v1763 = vpop.f32.mrf.mxu0
      %v1764 = vadd.f32 %v1719, %v1763
      %v1765 = vand.u32 %v1547, 4294901760
      %1766 = vmatmul.f32.gmra.mxu0 %v1765
      %v1767 = vpop.f32.mrf.mxu0
      %v1768 = vadd.f32 %v1725, %v1767
      %v1769 = vand.u32 %v1550, 4294901760
      %1770 = vmatmul.f32.gmra.mxu0 %v1769
      %v1771 = vpop.f32.mrf.mxu0
      %v1772 = vadd.f32 %v1731, %v1771
      %v1773 = vand.u32 %v1553, 4294901760
      %1774 = vmatmul.f32.gmra.mxu0 %v1773
      %v1775 = vpop.f32.mrf.mxu0
      %v1776 = vadd.f32 %v1737, %v1775
      %1777 = vdwg.mxu0
      %1778 = vmatpush.xpose.msra.mxu0 0.0
      %1779 = vmatpush.xpose.msra.mxu0 0.0
      %1780 = vmatpush.xpose.msra.mxu0 0.0
      %1781 = vmatpush.xpose.msra.mxu0 0.0
      %1782 = vmatpush.xpose.msra.mxu0 0.0
      %1783 = vmatpush.xpose.msra.mxu0 0.0
      %1784 = vmatpush.xpose.msra.mxu0 0.0
      %1785 = vmatpush.xpose.msra.mxu0 0.0
      %1786 = vmatpush.xpose.msra.mxu0 0.0
      %1787 = vmatpush.xpose.msra.mxu0 0.0
      %1788 = vmatpush.xpose.msra.mxu0 0.0
      %1789 = vmatpush.xpose.msra.mxu0 0.0
      %1790 = vmatpush.xpose.msra.mxu0 0.0
      %1791 = vmatpush.xpose.msra.mxu0 0.0
      %v1792 = vand.u32 %v1559, 4294901760
      %1793 = vmatpush.xpose.msra.mxu0 %v1792
      %v1794 = vand.u32 %v1556, 4294901760
      %1795 = vmatpush.xpose.msra.mxu0 %v1794
      %v1796 = vand.u32 %v1544, 4294901760
      %1797 = vmatmul.f32.gmra.mxu0 %v1796
      %v1798 = vpop.f32.mrf.mxu0
      %v1799 = vadd.f32 %v1764, %v1798
      %v1800 = vand.u32 %v1547, 4294901760
      %1801 = vmatmul.f32.gmra.mxu0 %v1800
      %v1802 = vpop.f32.mrf.mxu0
      %v1803 = vadd.f32 %v1768, %v1802
      %v1804 = vand.u32 %v1550, 4294901760
      %1805 = vmatmul.f32.gmra.mxu0 %v1804
      %v1806 = vpop.f32.mrf.mxu0
      %v1807 = vadd.f32 %v1772, %v1806
      %v1808 = vand.u32 %v1553, 4294901760
      %1809 = vmatmul.f32.gmra.mxu0 %v1808
      %v1810 = vpop.f32.mrf.mxu0
      %v1811 = vadd.f32 %v1776, %v1810
      %1812 = vdwg.mxu0
      %1813 = vst.msk [vmem:[%s278] sm:$0xff] %vm1494, %v1799
      %1814 = vst.msk [vmem:[%s278 + $0x8] sm:$0xff] %vm1494, %v1803
      %1815 = vst.msk [vmem:[%s278 + $0x10] sm:$0xff] %vm1494, %v1807
      %1816 = vst.msk [vmem:[%s278 + $0x18] sm:$0xff] %vm1494, %v1811
      %p1817 = scmp.lt.s32.totalorder %s18, 1
      %s1818 = scalar_select %p1817, %s18, 1
      %s1819 = smul.addr %s1818, 4
      %s1820 = smul.addr %s1819, 8
      %s1821 = scalar_lea.vmem %s7, %s1820
      // Predicated region
      $region49: #{tpu_custom_call.1} parent=47 // pred_check
        %p1822 = pneg %p188
      $region50: #{tpu_custom_call.1} parent=47 // pred_check_branch
        %1824 = sbr.rel (%p1822) target = $region52
      $region51: #{tpu_custom_call.1} parent=47 // pred_region
        _
      $region52: #{tpu_custom_call.1} parent=47 // pred_fallthru
        _
    $region48: #{tpu_custom_call.1} parent=5 // pred_fallthru
      _
    %p1825 = scmp.le.s32.totalorder 2, %s13
    // Predicated region
    $region53: #{tpu_custom_call.1} parent=5 // pred_check
      %p1826 = pneg %p1825
    $region54: #{tpu_custom_call.1} parent=5 // pred_check_branch
      %1828 = sbr.rel (%p1826) target = $region56
    $region55: #{tpu_custom_call.1} parent=5 // pred_region
      %s1829 = ssub.s32 %s13, 2
      // Predicated region
      $region57: #{tpu_custom_call.1} parent=55 // pred_check
        %p1830 = pneg %p194
      $region58: #{tpu_custom_call.1} parent=55 // pred_check_branch
        %1832 = sbr.rel (%p1830) target = $region60
      $region59: #{tpu_custom_call.1} parent=55 // pred_region
        %p1833 = scmp.lt.s32.totalorder %s19, 1
        %s1834 = scalar_select %p1833, %s19, 1
        %s1835 = smul.addr %s1834, 4
        %s1836 = smul.addr %s1835, 8
        %s1837 = scalar_lea.vmem %s7, %s1836
      $region60: #{tpu_custom_call.1} parent=55 // pred_fallthru
        _
    $region56: #{tpu_custom_call.1} parent=5 // pred_fallthru
      _
  $region6: #{tpu_custom_call.1} parent=0 // loop_footer
    %s17 = sadd.s32 1, %s13
  $region7: #{tpu_custom_call.1} parent=0 // loop_footer_branch
    %12 = sbr.rel target = $region3
  $region8: #{tpu_custom_call.1} parent=0 // loop_exit
    _

</llo_original>
